<compile_context>
chip_gen: v7x
topology: tpu7x:2x2x1
jax: 0.10.0
libtpu: 0.0.40
codegen_flags: <defaults>
</compile_context>

<pallas_src>
import functools

import jax
import jax.numpy as jnp
from jax.experimental import pallas as pl
from jax.experimental.pallas import tpu as pltpu


# Shift groups of the space-to-depth decomposition of the stride-2 layer_in conv.
# Shared between the weight packer and the kernel so layouts always match.
_S2D_SHIFTS = ((0, 0), (0, -1), (-1, 0), (-1, -1))


# ----------------------------------------------------------------------------
# Fused kernel: whole FullyConvNet forward for ONE batch element per grid step.
# ----------------------------------------------------------------------------
def _fcn_kernel(*refs, n_deep, residual):
    # refs = (x, w1p, b1, [wd, bd]*n_deep, w3p, b3, w4, b4, out, pad_in, pad_deep, col)
    n_in = 7 + 2 * n_deep
    x_ref = refs[0]
    w1_ref, b1_ref = refs[1], refs[2]
    deep_refs = [(refs[3 + 2 * d], refs[4 + 2 * d]) for d in range(n_deep)]
    w3_ref, b3_ref = refs[3 + 2 * n_deep], refs[4 + 2 * n_deep]
    w4_ref, b4_ref = refs[5 + 2 * n_deep], refs[6 + 2 * n_deep]
    out_ref = refs[n_in]
    pad_in, pad_deep, col = refs[n_in + 1], refs[n_in + 2], refs[n_in + 3]

    S = x_ref.shape[1]            # spatial size AFTER layer_in (stride-2): 8
    Cin4 = x_ref.shape[3]         # parity-packed input channels: 4*Cin
    Ch = w1_ref.shape[1]          # hidden channels
    M = S * S                     # matmul rows per batch element

    # Zero padded scratch ONCE per program; all later writes are interior-only,
    # so the 1-wide zero border (== conv zero padding) persists for every layer.
    pad_in[...] = jnp.zeros_like(pad_in)
    pad_deep[...] = jnp.zeros_like(pad_deep)

    def matmul(lhs, w_ref, b_ref):
        y = jnp.dot(lhs, w_ref[...], preferred_element_type=jnp.float32)
        return y + b_ref[...]                      # (M, Cout) + (1, Cout)

    # ---- layer_in: stride-2 3x3 conv on the space-to-depth input -------------
    # Each original tap becomes a {0,-1} shift of one parity plane, so the whole
    # stride-2 conv is 4 shifted slices -> one (M, 4*Cin4) @ (4*Cin4, Ch) matmul.
    pad_in[1:1 + S, 1:1 + S, :] = x_ref[0]
    for g, (dh, dw) in enumerate(_S2D_SHIFTS):
        col[:, :, g * Cin4:(g + 1) * Cin4] = pad_in[1 + dh:1 + dh + S,
                                                    1 + dw:1 + dw + S, :]
    lhs = col[:, :, :4 * Cin4].reshape(M, 4 * Cin4)
    act = jnp.maximum(matmul(lhs, w1_ref, b1_ref), 0.0)          # (M, Ch)

    def conv3x3(w_ref, b_ref):
        # im2col: 9 shifted interior views -> one (M, 9*Ch) slab -> ONE matmul.
        for t in range(9):
            dy, dx = t // 3 - 1, t % 3 - 1
            col[:, :, t * Ch:(t + 1) * Ch] = pad_deep[1 + dy:1 + dy + S,
                                                      1 + dx:1 + dx + S, :]
        return matmul(col[:, :, :9 * Ch].reshape(M, 9 * Ch), w_ref, b_ref)

    # ---- conv_deep stack: stride-1 3x3 convs at the true 8x8 resolution ------
    for w_d, b_d in deep_refs:
        pad_deep[1:1 + S, 1:1 + S, :] = act.reshape(S, S, Ch)
        nxt = jnp.maximum(conv3x3(w_d, b_d), 0.0)
        act = nxt + act if residual else nxt       # residual from live (M, Ch) value

    # ---- conv_out: stride-2 conv evaluated at every 8x8 offset ---------------
    # (MXU is idle at this size; true stride-2 outputs are the (h even, w even)
    #  positions and are selected in the pool below — no strided gathers needed.)
    pad_deep[1:1 + S, 1:1 + S, :] = act.reshape(S, S, Ch)
    h3 = jnp.maximum(conv3x3(w3_ref, b3_ref), 0.0)               # (M, Ch)

    # ---- global max-pool over the true (S/2 x S/2) stride-2 outputs ----------
    row = jax.lax.broadcasted_iota(jnp.int32, (M, Ch), 0)        # m = h*S + w
    keep = ((row % (2 * S)) < S) & ((row % 2) == 0)              # h even & w even
    pooled = jnp.max(jnp.where(keep, h3, -jnp.inf), axis=0, keepdims=True)  # (1, Ch)

    # ---- conv_1x1 head (1x1 conv on [Ch,1,1] == dense layer) + flatten -------
    out = matmul(pooled, w4_ref, b4_ref)                         # (1, Cout)
    out_ref[...] = out.reshape(out_ref.shape).astype(out_ref.dtype)


# ----------------------------------------------------------------------------
# Wrapper: single pallas_call, batch on a parallel grid axis.
# ----------------------------------------------------------------------------
def fcn_forward(packed, x_nchw, residual_block=False):
    B, Cin, H, W = x_nchw.shape
    assert H == W and H % 2 == 0, "kernel assumes square, even spatial dims"
    S = H // 2

    # NCHW -> NHWC -> space-to-depth (pure layout plumbing, fused by XLA under jit):
    # channel index of the packed input is (2*(h&1) + (w&1))*Cin + c.
    x = jnp.transpose(x_nchw, (0, 2, 3, 1)).astype(jnp.float32)
    x = x.reshape(B, S, 2, S, 2, Cin).transpose(0, 1, 3, 2, 4, 5)
    x = x.reshape(B, S, S, 4 * Cin)

    w1p, b1 = packed["layer_in"]
    deep = packed["deep"]
    w3p, b3 = packed["conv_out"]
    w4, b4 = packed["conv_1x1"]
    Ch, Cout, n_deep = w1p.shape[1], w4.shape[1], len(deep)

    inputs = [x, w1p, b1]
    for wd, bd in deep:
        inputs += [wd, bd]
    inputs += [w3p, b3, w4, b4]

    kernel = functools.partial(_fcn_kernel, n_deep=n_deep,
                               residual=bool(residual_block))

    M = S * S
    col_w = max(9 * Ch, 16 * Cin)

    # x is batch-blocked; weights/biases get full-shape blocks with constant
    # index_maps so they stay VMEM-resident across grid steps.
    in_specs = [pl.BlockSpec((1, S, S, 4 * Cin), lambda b: (b, 0, 0, 0))]
    in_specs += [pl.BlockSpec(a.shape, lambda b, nd=a.ndim: (0,) * nd)
                 for a in inputs[1:]]

    flops = B * (2 * M * (16 * Cin) * Ch
                 + (n_deep + 1) * 2 * M * (9 * Ch) * Ch
                 + 2 * Ch * Cout)
    bytes_accessed = (sum(int(a.size) * a.dtype.itemsize for a in inputs)
                      + B * Cout * 4)

    out = pl.pallas_call(
        kernel,
        grid=(B,),
        out_shape=jax.ShapeDtypeStruct((B, 1, Cout), jnp.float32),
        in_specs=in_specs,
        out_specs=pl.BlockSpec((1, 1, Cout), lambda b: (b, 0, 0)),
        scratch_shapes=[
            pltpu.VMEM((S + 2, S + 2, 4 * Cin), jnp.float32),  # padded s2d input
            pltpu.VMEM((S + 2, S + 2, Ch), jnp.float32),       # padded activation
            pltpu.VMEM((S, S, col_w), jnp.float32),            # im2col slab
        ],
        compiler_params=pltpu.CompilerParams(
            dimension_semantics=("parallel",)),                # 2nd TC on v7x
        cost_estimate=pl.CostEstimate(flops=flops, transcendentals=0,
                                      bytes_accessed=bytes_accessed),
    )(*inputs)
    return out.reshape(B, Cout)


# ----------------------------------------------------------------------------
# Parameters: canonical HWIO layout (PyTorch Conv2d-style init) + kernel packer.
# ----------------------------------------------------------------------------
def init_fcn_params(key, input_dim, hidden_dim, out_dim, depth=3):
    def conv_init(k, cin, cout, ksz):
        kw, kb = jax.random.split(k)
        bound = 1.0 / float(jnp.sqrt(jnp.float32(cin * ksz * ksz)))
        w = jax.random.uniform(kw, (ksz, ksz, cin, cout), jnp.float32, -bound, bound)
        b = jax.random.uniform(kb, (cout,), jnp.float32, -bound, bound)
        return w, b

    keys = jax.random.split(key, depth + 1)
    layer_in = conv_init(keys[0], input_dim, hidden_dim, 3)
    deep = [conv_init(keys[1 + i], hidden_dim, hidden_dim, 3) for i in range(depth - 2)]
    conv_out = conv_init(keys[depth - 1], hidden_dim, hidden_dim, 3)
    w4, b4 = conv_init(keys[depth], hidden_dim, out_dim, 1)
    return {"layer_in": layer_in, "deep": deep, "conv_out": conv_out,
            "conv_1x1": (w4[0, 0], b4)}            # (hidden, out), (out,)


def pack_fcn_params(params):
    """One-time, static repack of canonical HWIO weights into matmul layouts."""
    w1, b1 = params["layer_in"]                    # (3,3,Cin,Ch), (Ch,)
    cin, ch = w1.shape[2], w1.shape[3]

    def k_idx(shift, parity):
        # original 3x3 tap index along one axis for a stride-2 conv expressed on
        # the space-to-depth (shift in {0,-1}, parity in {0,1}) grid; None = no tap.
        if shift == 0 and parity == 0:
            return 1
        if shift == 0 and parity == 1:
            return 2
        if shift == -1 and parity == 1:
            return 0
        return None

    blocks = []
    for dh, dw in _S2D_SHIFTS:
        for ph in (0, 1):
            for pw in (0, 1):
                ky, kx = k_idx(dh, ph), k_idx(dw, pw)
                if ky is None or kx is None:
                    blocks.append(jnp.zeros((cin, ch), jnp.float32))
                else:
                    blocks.append(w1[ky, kx])
    w1p = jnp.concatenate(blocks, axis=0)          # (16*Cin, Ch)

    def pack3x3(w):                                # (3,3,C,Cout) -> (9*C, Cout)
        return w.reshape(9 * w.shape[2], w.shape[3])

    return {
        "layer_in": (w1p, b1.reshape(1, -1)),
        "deep": [(pack3x3(w), b.reshape(1, -1)) for (w, b) in params["deep"]],
        "conv_out": (pack3x3(params["conv_out"][0]),
                     params["conv_out"][1].reshape(1, -1)),
        "conv_1x1": (params["conv_1x1"][0], params["conv_1x1"][1].reshape(1, -1)),
    }


# ----------------------------------------------------------------------------
# Pure-JAX reference (mirrors the PyTorch forward exactly).
# ----------------------------------------------------------------------------
def fcn_forward_ref(params, x_nchw, residual_block=False):
    x = jnp.transpose(x_nchw, (0, 2, 3, 1)).astype(jnp.float32)

    def conv(x, w, b, stride):
        y = jax.lax.conv_general_dilated(
            x, w, window_strides=(stride, stride), padding=((1, 1), (1, 1)),
            dimension_numbers=("NHWC", "HWIO", "NHWC"),
            precision=jax.lax.Precision.HIGHEST)
        return y + b.reshape(1, 1, 1, -1)

    w1, b1 = params["layer_in"]
    out = jax.nn.relu(conv(x, w1, b1, 2))
    for wd, bd in params["deep"]:
        nxt = jax.nn.relu(conv(out, wd, bd, 1))
        out = nxt + out if residual_block else nxt
    w3, b3 = params["conv_out"]
    out = jax.nn.relu(conv(out, w3, b3, 2))
    out = jnp.max(out, axis=(1, 2))                # global max-pool + flatten
    w4, b4 = params["conv_1x1"]
    return jnp.dot(out, w4, precision=jax.lax.Precision.HIGHEST) + b4


# ----------------------------------------------------------------------------
if __name__ == "__main__":
    key = jax.random.PRNGKey(0)
    kx, kp = jax.random.split(key)

    # Small shapes consistent with the module: NCHW input [2, 4, 16, 16].
    B, C, H, W = 2, 4, 16, 16
    hidden_dim, out_dim, depth = 32, 16, 3

    x = jax.random.normal(kx, (B, C, H, W), jnp.float32)
    params = init_fcn_params(kp, input_dim=C, hidden_dim=hidden_dim,
                             out_dim=out_dim, depth=depth)
    packed = pack_fcn_params(params)               # one-time static repack

    fwd = jax.jit(fcn_forward, static_argnames=("residual_block",))

    ok = True
    for residual_block in (False, True):
        y = jax.block_until_ready(fwd(packed, x, residual_block=residual_block))
        y_ref = fcn_forward_ref(params, x, residual_block=residual_block)
        assert y.shape == (B, out_dim)
        ok &= bool(jnp.allclose(y, y_ref, atol=5e-3, rtol=5e-3))

    assert ok, "Pallas kernel does not match the reference forward pass"
    print("KERNEL_OK")
</pallas_src>

<mosaic_0001>
module attributes {stable_mosaic.version = 11 : i64} {
  func.func @_fcn_kernel(%arg0: i32, %arg1: memref<1x8x8x16xf32, #tpu.memory_space<vmem>>, %arg2: memref<64x32xf32, #tpu.memory_space<vmem>>, %arg3: memref<1x32xf32, #tpu.memory_space<vmem>>, %arg4: memref<288x32xf32, #tpu.memory_space<vmem>>, %arg5: memref<1x32xf32, #tpu.memory_space<vmem>>, %arg6: memref<288x32xf32, #tpu.memory_space<vmem>>, %arg7: memref<1x32xf32, #tpu.memory_space<vmem>>, %arg8: memref<32x16xf32, #tpu.memory_space<vmem>>, %arg9: memref<1x16xf32, #tpu.memory_space<vmem>>, %arg10: memref<1x1x16xf32, #tpu.memory_space<vmem>>, %arg11: memref<10x10x16xf32, #tpu.memory_space<vmem>>, %arg12: memref<10x10x32xf32, #tpu.memory_space<vmem>>, %arg13: memref<8x8x288xf32, #tpu.memory_space<vmem>>) attributes {dimension_semantics = [#tpu.dimension_semantics<parallel>], iteration_bounds = array<i64: 2>, scalar_prefetch = 0 : i64, scratch_operands = 3 : i64, tpu.core_type = #tpu.core_type<tc>, window_params = [{transform_indices = @transform_0, window_bounds = array<i64: 1, 8, 8, 16>}, {pipeline_mode = #tpu.pipeline_mode<synchronous>, transform_indices = @transform_1, window_bounds = array<i64: 64, 32>}, {pipeline_mode = #tpu.pipeline_mode<synchronous>, transform_indices = @transform_2, window_bounds = array<i64: 1, 32>}, {pipeline_mode = #tpu.pipeline_mode<synchronous>, transform_indices = @transform_3, window_bounds = array<i64: 288, 32>}, {pipeline_mode = #tpu.pipeline_mode<synchronous>, transform_indices = @transform_4, window_bounds = array<i64: 1, 32>}, {pipeline_mode = #tpu.pipeline_mode<synchronous>, transform_indices = @transform_5, window_bounds = array<i64: 288, 32>}, {pipeline_mode = #tpu.pipeline_mode<synchronous>, transform_indices = @transform_6, window_bounds = array<i64: 1, 32>}, {pipeline_mode = #tpu.pipeline_mode<synchronous>, transform_indices = @transform_7, window_bounds = array<i64: 32, 16>}, {pipeline_mode = #tpu.pipeline_mode<synchronous>, transform_indices = @transform_8, window_bounds = array<i64: 1, 16>}, {transform_indices = @transform_9, window_bounds = array<i64: 1, 1, 16>}]} {
    %cst = arith.constant 0.000000e+00 : f32
    %0 = vector.broadcast %cst : f32 to vector<10x10x16xf32>
    %c0 = arith.constant 0 : index
    %c0_0 = arith.constant 0 : index
    %c0_1 = arith.constant 0 : index
    %1 = vector.load %arg11[%c0, %c0_0, %c0_1] : memref<10x10x16xf32, #tpu.memory_space<vmem>>, vector<10x10x16xf32>
    tpu.vector_store %arg11[%c0, %c0_0, %c0_1], %0 {strides = array<i32>} : memref<10x10x16xf32, #tpu.memory_space<vmem>>, vector<10x10x16xf32>,
    %cst_2 = arith.constant 0.000000e+00 : f32
    %2 = vector.broadcast %cst_2 : f32 to vector<10x10x32xf32>
    %c0_3 = arith.constant 0 : index
    %c0_4 = arith.constant 0 : index
    %c0_5 = arith.constant 0 : index
    %3 = vector.load %arg12[%c0_3, %c0_4, %c0_5] : memref<10x10x32xf32, #tpu.memory_space<vmem>>, vector<10x10x32xf32>
    tpu.vector_store %arg12[%c0_3, %c0_4, %c0_5], %2 {strides = array<i32>} : memref<10x10x32xf32, #tpu.memory_space<vmem>>, vector<10x10x32xf32>,
    %c0_6 = arith.constant 0 : index
    %c0_7 = arith.constant 0 : index
    %c0_8 = arith.constant 0 : index
    %c0_9 = arith.constant 0 : index
    %4 = vector.load %arg1[%c0_6, %c0_7, %c0_8, %c0_9] : memref<1x8x8x16xf32, #tpu.memory_space<vmem>>, vector<1x8x8x16xf32>
    %5 = vector.shape_cast %4 : vector<1x8x8x16xf32> to vector<8x8x16xf32>
    %c1 = arith.constant 1 : index
    %c1_10 = arith.constant 1 : index
    %c0_11 = arith.constant 0 : index
    %6 = vector.load %arg11[%c1, %c1_10, %c0_11] : memref<10x10x16xf32, #tpu.memory_space<vmem>>, vector<8x8x16xf32>
    tpu.vector_store %arg11[%c1, %c1_10, %c0_11], %5 {strides = array<i32>} : memref<10x10x16xf32, #tpu.memory_space<vmem>>, vector<8x8x16xf32>,
    %c1_12 = arith.constant 1 : index
    %c1_13 = arith.constant 1 : index
    %c0_14 = arith.constant 0 : index
    %7 = vector.load %arg11[%c1_12, %c1_13, %c0_14] : memref<10x10x16xf32, #tpu.memory_space<vmem>>, vector<8x8x16xf32>
    %c0_15 = arith.constant 0 : index
    %c0_16 = arith.constant 0 : index
    %c0_17 = arith.constant 0 : index
    %8 = vector.load %arg13[%c0_15, %c0_16, %c0_17] : memref<8x8x288xf32, #tpu.memory_space<vmem>>, vector<8x8x16xf32>
    tpu.vector_store %arg13[%c0_15, %c0_16, %c0_17], %7 {strides = array<i32>} : memref<8x8x288xf32, #tpu.memory_space<vmem>>, vector<8x8x16xf32>,
    %c1_18 = arith.constant 1 : index
    %c0_19 = arith.constant 0 : index
    %c0_20 = arith.constant 0 : index
    %9 = vector.load %arg11[%c1_18, %c0_19, %c0_20] : memref<10x10x16xf32, #tpu.memory_space<vmem>>, vector<8x8x16xf32>
    %c0_21 = arith.constant 0 : index
    %c0_22 = arith.constant 0 : index
    %c16 = arith.constant 16 : index
    %10 = vector.load %arg13[%c0_21, %c0_22, %c16] : memref<8x8x288xf32, #tpu.memory_space<vmem>>, vector<8x8x16xf32>
    tpu.vector_store %arg13[%c0_21, %c0_22, %c16], %9 {strides = array<i32>} : memref<8x8x288xf32, #tpu.memory_space<vmem>>, vector<8x8x16xf32>,
    %c0_23 = arith.constant 0 : index
    %c1_24 = arith.constant 1 : index
    %c0_25 = arith.constant 0 : index
    %11 = vector.load %arg11[%c0_23, %c1_24, %c0_25] : memref<10x10x16xf32, #tpu.memory_space<vmem>>, vector<8x8x16xf32>
    %c0_26 = arith.constant 0 : index
    %c0_27 = arith.constant 0 : index
    %c32 = arith.constant 32 : index
    %12 = vector.load %arg13[%c0_26, %c0_27, %c32] : memref<8x8x288xf32, #tpu.memory_space<vmem>>, vector<8x8x16xf32>
    tpu.vector_store %arg13[%c0_26, %c0_27, %c32], %11 {strides = array<i32>} : memref<8x8x288xf32, #tpu.memory_space<vmem>>, vector<8x8x16xf32>,
    %c0_28 = arith.constant 0 : index
    %c0_29 = arith.constant 0 : index
    %c0_30 = arith.constant 0 : index
    %13 = vector.load %arg11[%c0_28, %c0_29, %c0_30] : memref<10x10x16xf32, #tpu.memory_space<vmem>>, vector<8x8x16xf32>
    %c0_31 = arith.constant 0 : index
    %c0_32 = arith.constant 0 : index
    %c48 = arith.constant 48 : index
    %14 = vector.load %arg13[%c0_31, %c0_32, %c48] : memref<8x8x288xf32, #tpu.memory_space<vmem>>, vector<8x8x16xf32>
    tpu.vector_store %arg13[%c0_31, %c0_32, %c48], %13 {strides = array<i32>} : memref<8x8x288xf32, #tpu.memory_space<vmem>>, vector<8x8x16xf32>,
    %c0_33 = arith.constant 0 : index
    %c0_34 = arith.constant 0 : index
    %c0_35 = arith.constant 0 : index
    %15 = vector.load %arg13[%c0_33, %c0_34, %c0_35] : memref<8x8x288xf32, #tpu.memory_space<vmem>>, vector<8x8x64xf32>
    %16 = vector.shape_cast %15 : vector<8x8x64xf32> to vector<64x64xf32>
    %c0_36 = arith.constant 0 : index
    %c0_37 = arith.constant 0 : index
    %17 = vector.load %arg2[%c0_36, %c0_37] : memref<64x32xf32, #tpu.memory_space<vmem>>, vector<64x32xf32>
    %cst_38 = arith.constant dense<0.000000e+00> : vector<64x32xf32>
    %18 = tpu.matmul %16, %17, %cst_38 {dimension_numbers = #tpu.dot_dimension_numbers<[1], [0], [0], [1], [0, 0, 1, 1], [], []>} : vector<64x64xf32>, vector<64x32xf32>, vector<64x32xf32> -> vector<64x32xf32>
    %c0_39 = arith.constant 0 : index
    %c0_40 = arith.constant 0 : index
    %19 = vector.load %arg3[%c0_39, %c0_40] : memref<1x32xf32, #tpu.memory_space<vmem>>, vector<1x32xf32>
    %20 = vector.broadcast %19 : vector<1x32xf32> to vector<64x32xf32>
    %21 = arith.addf %18, %20 : vector<64x32xf32>
    %cst_41 = arith.constant 0.000000e+00 : f32
    %22 = vector.broadcast %cst_41 : f32 to vector<64x32xf32>
    %23 = arith.maximumf %21, %22 : vector<64x32xf32>
    %24 = vector.shape_cast %23 : vector<64x32xf32> to vector<8x8x32xf32>
    %c1_42 = arith.constant 1 : index
    %c1_43 = arith.constant 1 : index
    %c0_44 = arith.constant 0 : index
    %25 = vector.load %arg12[%c1_42, %c1_43, %c0_44] : memref<10x10x32xf32, #tpu.memory_space<vmem>>, vector<8x8x32xf32>
    tpu.vector_store %arg12[%c1_42, %c1_43, %c0_44], %24 {strides = array<i32>} : memref<10x10x32xf32, #tpu.memory_space<vmem>>, vector<8x8x32xf32>,
    %c0_45 = arith.constant 0 : index
    %c0_46 = arith.constant 0 : index
    %c0_47 = arith.constant 0 : index
    %26 = vector.load %arg12[%c0_45, %c0_46, %c0_47] : memref<10x10x32xf32, #tpu.memory_space<vmem>>, vector<8x8x32xf32>
    %c0_48 = arith.constant 0 : index
    %c0_49 = arith.constant 0 : index
    %c0_50 = arith.constant 0 : index
    %27 = vector.load %arg13[%c0_48, %c0_49, %c0_50] : memref<8x8x288xf32, #tpu.memory_space<vmem>>, vector<8x8x32xf32>
    tpu.vector_store %arg13[%c0_48, %c0_49, %c0_50], %26 {strides = array<i32>} : memref<8x8x288xf32, #tpu.memory_space<vmem>>, vector<8x8x32xf32>,
    %c0_51 = arith.constant 0 : index
    %c1_52 = arith.constant 1 : index
    %c0_53 = arith.constant 0 : index
    %28 = vector.load %arg12[%c0_51, %c1_52, %c0_53] : memref<10x10x32xf32, #tpu.memory_space<vmem>>, vector<8x8x32xf32>
    %c0_54 = arith.constant 0 : index
    %c0_55 = arith.constant 0 : index
    %c32_56 = arith.constant 32 : index
    %29 = vector.load %arg13[%c0_54, %c0_55, %c32_56] : memref<8x8x288xf32, #tpu.memory_space<vmem>>, vector<8x8x32xf32>
    tpu.vector_store %arg13[%c0_54, %c0_55, %c32_56], %28 {strides = array<i32>} : memref<8x8x288xf32, #tpu.memory_space<vmem>>, vector<8x8x32xf32>,
    %c0_57 = arith.constant 0 : index
    %c2 = arith.constant 2 : index
    %c0_58 = arith.constant 0 : index
    %30 = vector.load %arg12[%c0_57, %c2, %c0_58] : memref<10x10x32xf32, #tpu.memory_space<vmem>>, vector<8x8x32xf32>
    %c0_59 = arith.constant 0 : index
    %c0_60 = arith.constant 0 : index
    %c64 = arith.constant 64 : index
    %31 = vector.load %arg13[%c0_59, %c0_60, %c64] : memref<8x8x288xf32, #tpu.memory_space<vmem>>, vector<8x8x32xf32>
    tpu.vector_store %arg13[%c0_59, %c0_60, %c64], %30 {strides = array<i32>} : memref<8x8x288xf32, #tpu.memory_space<vmem>>, vector<8x8x32xf32>,
    %c1_61 = arith.constant 1 : index
    %c0_62 = arith.constant 0 : index
    %c0_63 = arith.constant 0 : index
    %32 = vector.load %arg12[%c1_61, %c0_62, %c0_63] : memref<10x10x32xf32, #tpu.memory_space<vmem>>, vector<8x8x32xf32>
    %c0_64 = arith.constant 0 : index
    %c0_65 = arith.constant 0 : index
    %c96 = arith.constant 96 : index
    %33 = vector.load %arg13[%c0_64, %c0_65, %c96] : memref<8x8x288xf32, #tpu.memory_space<vmem>>, vector<8x8x32xf32>
    tpu.vector_store %arg13[%c0_64, %c0_65, %c96], %32 {strides = array<i32>} : memref<8x8x288xf32, #tpu.memory_space<vmem>>, vector<8x8x32xf32>,
    %c1_66 = arith.constant 1 : index
    %c1_67 = arith.constant 1 : index
    %c0_68 = arith.constant 0 : index
    %34 = vector.load %arg12[%c1_66, %c1_67, %c0_68] : memref<10x10x32xf32, #tpu.memory_space<vmem>>, vector<8x8x32xf32>
    %c0_69 = arith.constant 0 : index
    %c0_70 = arith.constant 0 : index
    %c128 = arith.constant 128 : index
    %35 = vector.load %arg13[%c0_69, %c0_70, %c128] : memref<8x8x288xf32, #tpu.memory_space<vmem>>, vector<8x8x32xf32>
    tpu.vector_store %arg13[%c0_69, %c0_70, %c128], %34 {strides = array<i32>} : memref<8x8x288xf32, #tpu.memory_space<vmem>>, vector<8x8x32xf32>,
    %c1_71 = arith.constant 1 : index
    %c2_72 = arith.constant 2 : index
    %c0_73 = arith.constant 0 : index
    %36 = vector.load %arg12[%c1_71, %c2_72, %c0_73] : memref<10x10x32xf32, #tpu.memory_space<vmem>>, vector<8x8x32xf32>
    %c0_74 = arith.constant 0 : index
    %c0_75 = arith.constant 0 : index
    %c160 = arith.constant 160 : index
    %37 = vector.load %arg13[%c0_74, %c0_75, %c160] : memref<8x8x288xf32, #tpu.memory_space<vmem>>, vector<8x8x32xf32>
    tpu.vector_store %arg13[%c0_74, %c0_75, %c160], %36 {strides = array<i32>} : memref<8x8x288xf32, #tpu.memory_space<vmem>>, vector<8x8x32xf32>,
    %c2_76 = arith.constant 2 : index
    %c0_77 = arith.constant 0 : index
    %c0_78 = arith.constant 0 : index
    %38 = vector.load %arg12[%c2_76, %c0_77, %c0_78] : memref<10x10x32xf32, #tpu.memory_space<vmem>>, vector<8x8x32xf32>
    %c0_79 = arith.constant 0 : index
    %c0_80 = arith.constant 0 : index
    %c192 = arith.constant 192 : index
    %39 = vector.load %arg13[%c0_79, %c0_80, %c192] : memref<8x8x288xf32, #tpu.memory_space<vmem>>, vector<8x8x32xf32>
    tpu.vector_store %arg13[%c0_79, %c0_80, %c192], %38 {strides = array<i32>} : memref<8x8x288xf32, #tpu.memory_space<vmem>>, vector<8x8x32xf32>,
    %c2_81 = arith.constant 2 : index
    %c1_82 = arith.constant 1 : index
    %c0_83 = arith.constant 0 : index
    %40 = vector.load %arg12[%c2_81, %c1_82, %c0_83] : memref<10x10x32xf32, #tpu.memory_space<vmem>>, vector<8x8x32xf32>
    %c0_84 = arith.constant 0 : index
    %c0_85 = arith.constant 0 : index
    %c224 = arith.constant 224 : index
    %41 = vector.load %arg13[%c0_84, %c0_85, %c224] : memref<8x8x288xf32, #tpu.memory_space<vmem>>, vector<8x8x32xf32>
    tpu.vector_store %arg13[%c0_84, %c0_85, %c224], %40 {strides = array<i32>} : memref<8x8x288xf32, #tpu.memory_space<vmem>>, vector<8x8x32xf32>,
    %c2_86 = arith.constant 2 : index
    %c2_87 = arith.constant 2 : index
    %c0_88 = arith.constant 0 : index
    %42 = vector.load %arg12[%c2_86, %c2_87, %c0_88] : memref<10x10x32xf32, #tpu.memory_space<vmem>>, vector<8x8x32xf32>
    %c0_89 = arith.constant 0 : index
    %c0_90 = arith.constant 0 : index
    %c256 = arith.constant 256 : index
    %43 = vector.load %arg13[%c0_89, %c0_90, %c256] : memref<8x8x288xf32, #tpu.memory_space<vmem>>, vector<8x8x32xf32>
    tpu.vector_store %arg13[%c0_89, %c0_90, %c256], %42 {strides = array<i32>} : memref<8x8x288xf32, #tpu.memory_space<vmem>>, vector<8x8x32xf32>,
    %c0_91 = arith.constant 0 : index
    %c0_92 = arith.constant 0 : index
    %c0_93 = arith.constant 0 : index
    %44 = vector.load %arg13[%c0_91, %c0_92, %c0_93] : memref<8x8x288xf32, #tpu.memory_space<vmem>>, vector<8x8x288xf32>
    %45 = vector.shape_cast %44 : vector<8x8x288xf32> to vector<64x288xf32>
    %c0_94 = arith.constant 0 : index
    %c0_95 = arith.constant 0 : index
    %46 = vector.load %arg4[%c0_94, %c0_95] : memref<288x32xf32, #tpu.memory_space<vmem>>, vector<288x32xf32>
    %cst_96 = arith.constant dense<0.000000e+00> : vector<64x32xf32>
    %47 = tpu.matmul %45, %46, %cst_96 {dimension_numbers = #tpu.dot_dimension_numbers<[1], [0], [0], [1], [0, 0, 1, 1], [], []>} : vector<64x288xf32>, vector<288x32xf32>, vector<64x32xf32> -> vector<64x32xf32>
    %c0_97 = arith.constant 0 : index
    %c0_98 = arith.constant 0 : index
    %48 = vector.load %arg5[%c0_97, %c0_98] : memref<1x32xf32, #tpu.memory_space<vmem>>, vector<1x32xf32>
    %49 = vector.broadcast %48 : vector<1x32xf32> to vector<64x32xf32>
    %50 = arith.addf %47, %49 : vector<64x32xf32>
    %cst_99 = arith.constant 0.000000e+00 : f32
    %51 = vector.broadcast %cst_99 : f32 to vector<64x32xf32>
    %52 = arith.maximumf %50, %51 : vector<64x32xf32>
    %53 = vector.shape_cast %52 : vector<64x32xf32> to vector<8x8x32xf32>
    %c1_100 = arith.constant 1 : index
    %c1_101 = arith.constant 1 : index
    %c0_102 = arith.constant 0 : index
    %54 = vector.load %arg12[%c1_100, %c1_101, %c0_102] : memref<10x10x32xf32, #tpu.memory_space<vmem>>, vector<8x8x32xf32>
    tpu.vector_store %arg12[%c1_100, %c1_101, %c0_102], %53 {strides = array<i32>} : memref<10x10x32xf32, #tpu.memory_space<vmem>>, vector<8x8x32xf32>,
    %c0_103 = arith.constant 0 : index
    %c0_104 = arith.constant 0 : index
    %c0_105 = arith.constant 0 : index
    %55 = vector.load %arg12[%c0_103, %c0_104, %c0_105] : memref<10x10x32xf32, #tpu.memory_space<vmem>>, vector<8x8x32xf32>
    %c0_106 = arith.constant 0 : index
    %c0_107 = arith.constant 0 : index
    %c0_108 = arith.constant 0 : index
    %56 = vector.load %arg13[%c0_106, %c0_107, %c0_108] : memref<8x8x288xf32, #tpu.memory_space<vmem>>, vector<8x8x32xf32>
    tpu.vector_store %arg13[%c0_106, %c0_107, %c0_108], %55 {strides = array<i32>} : memref<8x8x288xf32, #tpu.memory_space<vmem>>, vector<8x8x32xf32>,
    %c0_109 = arith.constant 0 : index
    %c1_110 = arith.constant 1 : index
    %c0_111 = arith.constant 0 : index
    %57 = vector.load %arg12[%c0_109, %c1_110, %c0_111] : memref<10x10x32xf32, #tpu.memory_space<vmem>>, vector<8x8x32xf32>
    %c0_112 = arith.constant 0 : index
    %c0_113 = arith.constant 0 : index
    %c32_114 = arith.constant 32 : index
    %58 = vector.load %arg13[%c0_112, %c0_113, %c32_114] : memref<8x8x288xf32, #tpu.memory_space<vmem>>, vector<8x8x32xf32>
    tpu.vector_store %arg13[%c0_112, %c0_113, %c32_114], %57 {strides = array<i32>} : memref<8x8x288xf32, #tpu.memory_space<vmem>>, vector<8x8x32xf32>,
    %c0_115 = arith.constant 0 : index
    %c2_116 = arith.constant 2 : index
    %c0_117 = arith.constant 0 : index
    %59 = vector.load %arg12[%c0_115, %c2_116, %c0_117] : memref<10x10x32xf32, #tpu.memory_space<vmem>>, vector<8x8x32xf32>
    %c0_118 = arith.constant 0 : index
    %c0_119 = arith.constant 0 : index
    %c64_120 = arith.constant 64 : index
    %60 = vector.load %arg13[%c0_118, %c0_119, %c64_120] : memref<8x8x288xf32, #tpu.memory_space<vmem>>, vector<8x8x32xf32>
    tpu.vector_store %arg13[%c0_118, %c0_119, %c64_120], %59 {strides = array<i32>} : memref<8x8x288xf32, #tpu.memory_space<vmem>>, vector<8x8x32xf32>,
    %c1_121 = arith.constant 1 : index
    %c0_122 = arith.constant 0 : index
    %c0_123 = arith.constant 0 : index
    %61 = vector.load %arg12[%c1_121, %c0_122, %c0_123] : memref<10x10x32xf32, #tpu.memory_space<vmem>>, vector<8x8x32xf32>
    %c0_124 = arith.constant 0 : index
    %c0_125 = arith.constant 0 : index
    %c96_126 = arith.constant 96 : index
    %62 = vector.load %arg13[%c0_124, %c0_125, %c96_126] : memref<8x8x288xf32, #tpu.memory_space<vmem>>, vector<8x8x32xf32>
    tpu.vector_store %arg13[%c0_124, %c0_125, %c96_126], %61 {strides = array<i32>} : memref<8x8x288xf32, #tpu.memory_space<vmem>>, vector<8x8x32xf32>,
    %c1_127 = arith.constant 1 : index
    %c1_128 = arith.constant 1 : index
    %c0_129 = arith.constant 0 : index
    %63 = vector.load %arg12[%c1_127, %c1_128, %c0_129] : memref<10x10x32xf32, #tpu.memory_space<vmem>>, vector<8x8x32xf32>
    %c0_130 = arith.constant 0 : index
    %c0_131 = arith.constant 0 : index
    %c128_132 = arith.constant 128 : index
    %64 = vector.load %arg13[%c0_130, %c0_131, %c128_132] : memref<8x8x288xf32, #tpu.memory_space<vmem>>, vector<8x8x32xf32>
    tpu.vector_store %arg13[%c0_130, %c0_131, %c128_132], %63 {strides = array<i32>} : memref<8x8x288xf32, #tpu.memory_space<vmem>>, vector<8x8x32xf32>,
    %c1_133 = arith.constant 1 : index
    %c2_134 = arith.constant 2 : index
    %c0_135 = arith.constant 0 : index
    %65 = vector.load %arg12[%c1_133, %c2_134, %c0_135] : memref<10x10x32xf32, #tpu.memory_space<vmem>>, vector<8x8x32xf32>
    %c0_136 = arith.constant 0 : index
    %c0_137 = arith.constant 0 : index
    %c160_138 = arith.constant 160 : index
    %66 = vector.load %arg13[%c0_136, %c0_137, %c160_138] : memref<8x8x288xf32, #tpu.memory_space<vmem>>, vector<8x8x32xf32>
    tpu.vector_store %arg13[%c0_136, %c0_137, %c160_138], %65 {strides = array<i32>} : memref<8x8x288xf32, #tpu.memory_space<vmem>>, vector<8x8x32xf32>,
    %c2_139 = arith.constant 2 : index
    %c0_140 = arith.constant 0 : index
    %c0_141 = arith.constant 0 : index
    %67 = vector.load %arg12[%c2_139, %c0_140, %c0_141] : memref<10x10x32xf32, #tpu.memory_space<vmem>>, vector<8x8x32xf32>
    %c0_142 = arith.constant 0 : index
    %c0_143 = arith.constant 0 : index
    %c192_144 = arith.constant 192 : index
    %68 = vector.load %arg13[%c0_142, %c0_143, %c192_144] : memref<8x8x288xf32, #tpu.memory_space<vmem>>, vector<8x8x32xf32>
    tpu.vector_store %arg13[%c0_142, %c0_143, %c192_144], %67 {strides = array<i32>} : memref<8x8x288xf32, #tpu.memory_space<vmem>>, vector<8x8x32xf32>,
    %c2_145 = arith.constant 2 : index
    %c1_146 = arith.constant 1 : index
    %c0_147 = arith.constant 0 : index
    %69 = vector.load %arg12[%c2_145, %c1_146, %c0_147] : memref<10x10x32xf32, #tpu.memory_space<vmem>>, vector<8x8x32xf32>
    %c0_148 = arith.constant 0 : index
    %c0_149 = arith.constant 0 : index
    %c224_150 = arith.constant 224 : index
    %70 = vector.load %arg13[%c0_148, %c0_149, %c224_150] : memref<8x8x288xf32, #tpu.memory_space<vmem>>, vector<8x8x32xf32>
    tpu.vector_store %arg13[%c0_148, %c0_149, %c224_150], %69 {strides = array<i32>} : memref<8x8x288xf32, #tpu.memory_space<vmem>>, vector<8x8x32xf32>,
    %c2_151 = arith.constant 2 : index
    %c2_152 = arith.constant 2 : index
    %c0_153 = arith.constant 0 : index
    %71 = vector.load %arg12[%c2_151, %c2_152, %c0_153] : memref<10x10x32xf32, #tpu.memory_space<vmem>>, vector<8x8x32xf32>
    %c0_154 = arith.constant 0 : index
    %c0_155 = arith.constant 0 : index
    %c256_156 = arith.constant 256 : index
    %72 = vector.load %arg13[%c0_154, %c0_155, %c256_156] : memref<8x8x288xf32, #tpu.memory_space<vmem>>, vector<8x8x32xf32>
    tpu.vector_store %arg13[%c0_154, %c0_155, %c256_156], %71 {strides = array<i32>} : memref<8x8x288xf32, #tpu.memory_space<vmem>>, vector<8x8x32xf32>,
    %c0_157 = arith.constant 0 : index
    %c0_158 = arith.constant 0 : index
    %c0_159 = arith.constant 0 : index
    %73 = vector.load %arg13[%c0_157, %c0_158, %c0_159] : memref<8x8x288xf32, #tpu.memory_space<vmem>>, vector<8x8x288xf32>
    %74 = vector.shape_cast %73 : vector<8x8x288xf32> to vector<64x288xf32>
    %c0_160 = arith.constant 0 : index
    %c0_161 = arith.constant 0 : index
    %75 = vector.load %arg6[%c0_160, %c0_161] : memref<288x32xf32, #tpu.memory_space<vmem>>, vector<288x32xf32>
    %cst_162 = arith.constant dense<0.000000e+00> : vector<64x32xf32>
    %76 = tpu.matmul %74, %75, %cst_162 {dimension_numbers = #tpu.dot_dimension_numbers<[1], [0], [0], [1], [0, 0, 1, 1], [], []>} : vector<64x288xf32>, vector<288x32xf32>, vector<64x32xf32> -> vector<64x32xf32>
    %c0_163 = arith.constant 0 : index
    %c0_164 = arith.constant 0 : index
    %77 = vector.load %arg7[%c0_163, %c0_164] : memref<1x32xf32, #tpu.memory_space<vmem>>, vector<1x32xf32>
    %78 = vector.broadcast %77 : vector<1x32xf32> to vector<64x32xf32>
    %79 = arith.addf %76, %78 : vector<64x32xf32>
    %cst_165 = arith.constant 0.000000e+00 : f32
    %80 = vector.broadcast %cst_165 : f32 to vector<64x32xf32>
    %81 = arith.maximumf %79, %80 : vector<64x32xf32>
    %82 = tpu.iota {dimensions = array<i32: 0>} : vector<64x32xi32>
    %c16_i32 = arith.constant 16 : i32
    %c0_i32 = arith.constant 0 : i32
    %83 = arith.cmpi eq, %c16_i32, %c0_i32 : i32
    %c1_i32 = arith.constant 1 : i32
    %84 = arith.select %83, %c1_i32, %c16_i32 : i32
    %85 = vector.broadcast %84 : i32 to vector<64x32xi32>
    %86 = arith.remsi %82, %85 : vector<64x32xi32>
    %c0_i32_166 = arith.constant 0 : i32
    %87 = vector.broadcast %c0_i32_166 : i32 to vector<64x32xi32>
    %88 = arith.cmpi ne, %86, %87 : vector<64x32xi32>
    %c0_i32_167 = arith.constant 0 : i32
    %89 = vector.broadcast %c0_i32_167 : i32 to vector<64x32xi32>
    %90 = arith.cmpi slt, %86, %89 : vector<64x32xi32>
    %c0_i32_168 = arith.constant 0 : i32
    %91 = arith.cmpi slt, %84, %c0_i32_168 : i32
    %92 = vector.broadcast %91 : i1 to vector<64x32xi1>
    %93 = vector.broadcast %92 : vector<64x32xi1> to vector<64x32xi1>
    %94 = arith.xori %90, %93 : vector<64x32xi1>
    %95 = arith.andi %94, %88 : vector<64x32xi1>
    %96 = vector.broadcast %84 : i32 to vector<64x32xi32>
    %97 = arith.addi %86, %96 : vector<64x32xi32>
    %98 = arith.select %95, %97, %86 : vector<64x32xi1>, vector<64x32xi32>
    %c8_i32 = arith.constant 8 : i32
    %99 = vector.broadcast %c8_i32 : i32 to vector<64x32xi32>
    %100 = arith.cmpi slt, %98, %99 : vector<64x32xi32>
    %c2_i32 = arith.constant 2 : i32
    %c0_i32_169 = arith.constant 0 : i32
    %101 = arith.cmpi eq, %c2_i32, %c0_i32_169 : i32
    %c1_i32_170 = arith.constant 1 : i32
    %102 = arith.select %101, %c1_i32_170, %c2_i32 : i32
    %103 = vector.broadcast %102 : i32 to vector<64x32xi32>
    %104 = arith.remsi %82, %103 : vector<64x32xi32>
    %c0_i32_171 = arith.constant 0 : i32
    %105 = vector.broadcast %c0_i32_171 : i32 to vector<64x32xi32>
    %106 = arith.cmpi ne, %104, %105 : vector<64x32xi32>
    %c0_i32_172 = arith.constant 0 : i32
    %107 = vector.broadcast %c0_i32_172 : i32 to vector<64x32xi32>
    %108 = arith.cmpi slt, %104, %107 : vector<64x32xi32>
    %c0_i32_173 = arith.constant 0 : i32
    %109 = arith.cmpi slt, %102, %c0_i32_173 : i32
    %110 = vector.broadcast %109 : i1 to vector<64x32xi1>
    %111 = vector.broadcast %110 : vector<64x32xi1> to vector<64x32xi1>
    %112 = arith.xori %108, %111 : vector<64x32xi1>
    %113 = arith.andi %112, %106 : vector<64x32xi1>
    %114 = vector.broadcast %102 : i32 to vector<64x32xi32>
    %115 = arith.addi %104, %114 : vector<64x32xi32>
    %116 = arith.select %113, %115, %104 : vector<64x32xi1>, vector<64x32xi32>
    %c0_i32_174 = arith.constant 0 : i32
    %117 = vector.broadcast %c0_i32_174 : i32 to vector<64x32xi32>
    %118 = arith.cmpi eq, %116, %117 : vector<64x32xi32>
    %119 = arith.andi %100, %118 : vector<64x32xi1>
    %cst_175 = arith.constant 0xFF800000 : f32
    %120 = vector.broadcast %cst_175 : f32 to vector<64x32xf32>
    %121 = arith.select %119, %81, %120 : vector<64x32xi1>, vector<64x32xf32>
    %cst_176 = arith.constant dense<0xFF800000> : vector<32xf32>
    %122 = vector.multi_reduction <maximumf>, %121, %cst_176 [0] : vector<64x32xf32> to vector<32xf32>
    %123 = vector.shape_cast %122 : vector<32xf32> to vector<1x32xf32>
    %c0_177 = arith.constant 0 : index
    %c0_178 = arith.constant 0 : index
    %124 = vector.load %arg8[%c0_177, %c0_178] : memref<32x16xf32, #tpu.memory_space<vmem>>, vector<32x16xf32>
    %cst_179 = arith.constant dense<0.000000e+00> : vector<1x16xf32>
    %125 = tpu.matmul %123, %124, %cst_179 {dimension_numbers = #tpu.dot_dimension_numbers<[1], [0], [0], [1], [0, 0, 1, 1], [], []>} : vector<1x32xf32>, vector<32x16xf32>, vector<1x16xf32> -> vector<1x16xf32>
    %c0_180 = arith.constant 0 : index
    %c0_181 = arith.constant 0 : index
    %126 = vector.load %arg9[%c0_180, %c0_181] : memref<1x16xf32, #tpu.memory_space<vmem>>, vector<1x16xf32>
    %127 = arith.addf %125, %126 : vector<1x16xf32>
    %128 = vector.shape_cast %127 : vector<1x16xf32> to vector<1x1x16xf32>
    %c0_182 = arith.constant 0 : index
    %c0_183 = arith.constant 0 : index
    %c0_184 = arith.constant 0 : index
    %129 = vector.load %arg10[%c0_182, %c0_183, %c0_184] : memref<1x1x16xf32, #tpu.memory_space<vmem>>, vector<1x1x16xf32>
    tpu.vector_store %arg10[%c0_182, %c0_183, %c0_184], %128 {strides = array<i32>} : memref<1x1x16xf32, #tpu.memory_space<vmem>>, vector<1x1x16xf32>,
    return
  }
  func.func @transform_0(%arg0: i32) -> (i32, i32, i32, i32) {
    %c0_i32 = arith.constant 0 : i32
    %c0_i32_0 = arith.constant 0 : i32
    %c0_i32_1 = arith.constant 0 : i32
    %c0_i32_2 = arith.constant 0 : i32
    return %arg0, %c0_i32, %c0_i32_0, %c0_i32_1 : i32, i32, i32, i32
  }
  func.func @transform_1(%arg0: i32) -> (i32, i32) {
    %c0_i32 = arith.constant 0 : i32
    %c0_i32_0 = arith.constant 0 : i32
    %c0_i32_1 = arith.constant 0 : i32
    return %c0_i32, %c0_i32_0 : i32, i32
  }
  func.func @transform_2(%arg0: i32) -> (i32, i32) {
    %c0_i32 = arith.constant 0 : i32
    %c0_i32_0 = arith.constant 0 : i32
    %c0_i32_1 = arith.constant 0 : i32
    return %c0_i32, %c0_i32_0 : i32, i32
  }
  func.func @transform_3(%arg0: i32) -> (i32, i32) {
    %c0_i32 = arith.constant 0 : i32
    %c0_i32_0 = arith.constant 0 : i32
    %c0_i32_1 = arith.constant 0 : i32
    return %c0_i32, %c0_i32_0 : i32, i32
  }
  func.func @transform_4(%arg0: i32) -> (i32, i32) {
    %c0_i32 = arith.constant 0 : i32
    %c0_i32_0 = arith.constant 0 : i32
    %c0_i32_1 = arith.constant 0 : i32
    return %c0_i32, %c0_i32_0 : i32, i32
  }
  func.func @transform_5(%arg0: i32) -> (i32, i32) {
    %c0_i32 = arith.constant 0 : i32
    %c0_i32_0 = arith.constant 0 : i32
    %c0_i32_1 = arith.constant 0 : i32
    return %c0_i32, %c0_i32_0 : i32, i32
  }
  func.func @transform_6(%arg0: i32) -> (i32, i32) {
    %c0_i32 = arith.constant 0 : i32
    %c0_i32_0 = arith.constant 0 : i32
    %c0_i32_1 = arith.constant 0 : i32
    return %c0_i32, %c0_i32_0 : i32, i32
  }
  func.func @transform_7(%arg0: i32) -> (i32, i32) {
    %c0_i32 = arith.constant 0 : i32
    %c0_i32_0 = arith.constant 0 : i32
    %c0_i32_1 = arith.constant 0 : i32
    return %c0_i32, %c0_i32_0 : i32, i32
  }
  func.func @transform_8(%arg0: i32) -> (i32, i32) {
    %c0_i32 = arith.constant 0 : i32
    %c0_i32_0 = arith.constant 0 : i32
    %c0_i32_1 = arith.constant 0 : i32
    return %c0_i32, %c0_i32_0 : i32, i32
  }
  func.func @transform_9(%arg0: i32) -> (i32, i32, i32) {
    %c0_i32 = arith.constant 0 : i32
    %c0_i32_0 = arith.constant 0 : i32
    %c0_i32_1 = arith.constant 0 : i32
    return %arg0, %c0_i32, %c0_i32_0 : i32, i32, i32
  }
}

</mosaic_0001>

<llo_original>
// kernel: fcn_forward.1
$region0: #{fcn_forward.1}
  #allocation0 [shape = 'u32[]', space=smem, size = 0x4, offset = 0x4, fixed_abs, tag = 'smem constant byte address 0x4 - core index']
  #allocation1 [shape = 'u32[144,128]{1,0:T(1,128)}', space=vmem, size = 0x12000, scoped, tag = 'internal scratch']
  #allocation2 [shape = 'f32[10,10,16]{2,1,0:T(8,128)}', space=vmem, size = 0x14000, scoped, tag = 'scratch operand']
  #allocation3 [shape = 'f32[10,10,32]{2,1,0:T(8,128)}', space=vmem, size = 0x14000, scoped, tag = 'scratch operand']
  #allocation4 [shape = 'f32[8,8,288]{2,1,0:T(8,128)}', space=vmem, size = 0x18000, scoped, tag = 'scratch operand']
  %s0 = inlined_call_operand.vmem [shape: f32[2,8,8,16], index: 0, kind: input, shape index: {}]
  %s1 = inlined_call_operand.vmem [shape: f32[64,32], index: 1, kind: input, shape index: {}]
  %s2 = inlined_call_operand.vmem [shape: f32[1,32], index: 2, kind: input, shape index: {}]
  %s3 = inlined_call_operand.vmem [shape: f32[288,32], index: 3, kind: input, shape index: {}]
  %s4 = inlined_call_operand.vmem [shape: f32[1,32], index: 4, kind: input, shape index: {}]
  %s5 = inlined_call_operand.vmem [shape: f32[288,32], index: 5, kind: input, shape index: {}]
  %s6 = inlined_call_operand.vmem [shape: f32[1,32], index: 6, kind: input, shape index: {}]
  %s7 = inlined_call_operand.vmem [shape: f32[32,16], index: 7, kind: input, shape index: {}]
  %s8 = inlined_call_operand.vmem [shape: f32[1,16], index: 8, kind: input, shape index: {}]
  %s9 = inlined_call_operand.hbm [shape: f32[2,1,16], index: 9, kind: output, shape index: {}]
  %s10 = sld [smem:[#allocation0]]
  $region69: #{fcn_forward.1} parent=0
    _
  %s12 = ssub.s32 1, %s10
  %s13 = scalar_select 0, %s12, %s10
  $region1: #{fcn_forward.1} parent=0
    #allocation5 [shape = 'u8[1024]{0}', space=vmem, size = 0x400, scoped, tag = 'output window, operand 0']
    #allocation6 [shape = 's32[2]{0}', space=sflag, size = 0x8, scoped, tag = 'scoped memory for fcn_forward.1']
    %14 = vsyncpa [#allocation6], 0
    %s15 = scalar_lea.sflag [#allocation6], 1
    %16 = vsyncpa %s15, 0
    loop: start=0, step=1, limit=4
    $region2: #{fcn_forward.1} parent=1 // loop_pre_header
      _
    $region3: #{fcn_forward.1} parent=1 // loop_header
      %s18 = sphi 0, %s22
      %p19 = scmp.ge.s32.totalorder %s18, 4
      %s28 = sphi 0, %s30
      %s31 = sphi 0, %s28
      %s32 = sphi 0, %s31
      %s48 = sphi 0, %s32
      %s52 = sphi 0, %s52
      %s54 = sphi 0, %s52
      %s55 = sphi 0, %s54
      %s69 = sphi 0, %s55
      %s73 = sphi 0, %s73
      %s75 = sphi 0, %s73
      %s76 = sphi 0, %s75
      %s90 = sphi 0, %s76
      %s94 = sphi 0, %s94
      %s96 = sphi 0, %s94
      %s97 = sphi 0, %s96
      %s111 = sphi 0, %s97
      %s115 = sphi 0, %s115
      %s117 = sphi 0, %s115
      %s118 = sphi 0, %s117
      %s132 = sphi 0, %s118
      %s136 = sphi 0, %s136
      %s138 = sphi 0, %s136
      %s139 = sphi 0, %s138
      %s153 = sphi 0, %s139
      %s157 = sphi 0, %s157
      %s159 = sphi 0, %s157
      %s160 = sphi 0, %s159
      %s174 = sphi 0, %s160
      %s178 = sphi 0, %s178
      %s180 = sphi 0, %s178
      %s181 = sphi 0, %s180
      %s195 = sphi 0, %s181
      %s199 = sphi 0, %s199
      %s201 = sphi 0, %s199
      %s202 = sphi 0, %s201
      %s216 = sphi 0, %s202
      %s222 = sphi 0, %s224
      %s225 = sphi 0, %s222
      %s226 = sphi 0, %s225
      %s242 = sphi 0, %s226
    $region4: #{fcn_forward.1} parent=1 // loop_header_branch
      %21 = sbr.rel (%p19) target = $region8
    $region5: #{fcn_forward.1} parent=1 // loop_body
      %s23 = ssub.s32 %s18, 1
      %s24 = ssub.s32 %s18, 2
      %s25 = sadd.s32 %s18, 1
      %s26 = ssub.s32 %s18, %s25
      %p27 = scmp.eq.s32.totalorder %s26, 0
      %s29 = sadd.s32 %s28, 1
      %s30 = scalar_select %p27, %s28, %s29
      %p33 = pneg %p27
      %p34 = scmp.eq.s32.totalorder %s18, 1
      %p35 = por %p33, %p34
      %p36 = scmp.ne.s32.totalorder %s28, %s31
      %p37 = scmp.eq.s32.totalorder %s18, 0
      %p38 = por %p36, %p37
      %p39 = scmp.ne.s32.totalorder %s28, %s31
      %p40 = scmp.eq.s32.totalorder %s23, 1
      %p41 = por %p39, %p40
      %p42 = scmp.ne.s32.totalorder %s31, %s32
      %p43 = scmp.eq.s32.totalorder %s23, 0
      %p44 = por %p42, %p43
      %p45 = scmp.ne.s32.totalorder %s31, %s32
      %p46 = scmp.eq.s32.totalorder %s24, 1
      %p47 = por %p45, %p46
      %p49 = scmp.ne.s32.totalorder %s32, %s48
      %p50 = scmp.eq.s32.totalorder %s24, 0
      %p51 = por %p49, %p50
      %s53 = sadd.s32 %s52, 1
      %p56 = scmp.eq.s32.totalorder %s18, 1
      %p57 = scmp.ne.s32.totalorder %s52, %s54
      %p58 = scmp.eq.s32.totalorder %s18, 0
      %p59 = por %p57, %p58
      %p60 = scmp.ne.s32.totalorder %s52, %s54
      %p61 = scmp.eq.s32.totalorder %s23, 1
      %p62 = por %p60, %p61
      %p63 = scmp.ne.s32.totalorder %s54, %s55
      %p64 = scmp.eq.s32.totalorder %s23, 0
      %p65 = por %p63, %p64
      %p66 = scmp.ne.s32.totalorder %s54, %s55
      %p67 = scmp.eq.s32.totalorder %s24, 1
      %p68 = por %p66, %p67
      %p70 = scmp.ne.s32.totalorder %s55, %s69
      %p71 = scmp.eq.s32.totalorder %s24, 0
      %p72 = por %p70, %p71
      %s74 = sadd.s32 %s73, 1
      %p77 = scmp.eq.s32.totalorder %s18, 1
      %p78 = scmp.ne.s32.totalorder %s73, %s75
      %p79 = scmp.eq.s32.totalorder %s18, 0
      %p80 = por %p78, %p79
      %p81 = scmp.ne.s32.totalorder %s73, %s75
      %p82 = scmp.eq.s32.totalorder %s23, 1
      %p83 = por %p81, %p82
      %p84 = scmp.ne.s32.totalorder %s75, %s76
      %p85 = scmp.eq.s32.totalorder %s23, 0
      %p86 = por %p84, %p85
      %p87 = scmp.ne.s32.totalorder %s75, %s76
      %p88 = scmp.eq.s32.totalorder %s24, 1
      %p89 = por %p87, %p88
      %p91 = scmp.ne.s32.totalorder %s76, %s90
      %p92 = scmp.eq.s32.totalorder %s24, 0
      %p93 = por %p91, %p92
      %s95 = sadd.s32 %s94, 1
      %p98 = scmp.eq.s32.totalorder %s18, 1
      %p99 = scmp.ne.s32.totalorder %s94, %s96
      %p100 = scmp.eq.s32.totalorder %s18, 0
      %p101 = por %p99, %p100
      %p102 = scmp.ne.s32.totalorder %s94, %s96
      %p103 = scmp.eq.s32.totalorder %s23, 1
      %p104 = por %p102, %p103
      %p105 = scmp.ne.s32.totalorder %s96, %s97
      %p106 = scmp.eq.s32.totalorder %s23, 0
      %p107 = por %p105, %p106
      %p108 = scmp.ne.s32.totalorder %s96, %s97
      %p109 = scmp.eq.s32.totalorder %s24, 1
      %p110 = por %p108, %p109
      %p112 = scmp.ne.s32.totalorder %s97, %s111
      %p113 = scmp.eq.s32.totalorder %s24, 0
      %p114 = por %p112, %p113
      %s116 = sadd.s32 %s115, 1
      %p119 = scmp.eq.s32.totalorder %s18, 1
      %p120 = scmp.ne.s32.totalorder %s115, %s117
      %p121 = scmp.eq.s32.totalorder %s18, 0
      %p122 = por %p120, %p121
      %p123 = scmp.ne.s32.totalorder %s115, %s117
      %p124 = scmp.eq.s32.totalorder %s23, 1
      %p125 = por %p123, %p124
      %p126 = scmp.ne.s32.totalorder %s117, %s118
      %p127 = scmp.eq.s32.totalorder %s23, 0
      %p128 = por %p126, %p127
      %p129 = scmp.ne.s32.totalorder %s117, %s118
      %p130 = scmp.eq.s32.totalorder %s24, 1
      %p131 = por %p129, %p130
      %p133 = scmp.ne.s32.totalorder %s118, %s132
      %p134 = scmp.eq.s32.totalorder %s24, 0
      %p135 = por %p133, %p134
      %s137 = sadd.s32 %s136, 1
      %p140 = scmp.eq.s32.totalorder %s18, 1
      %p141 = scmp.ne.s32.totalorder %s136, %s138
      %p142 = scmp.eq.s32.totalorder %s18, 0
      %p143 = por %p141, %p142
      %p144 = scmp.ne.s32.totalorder %s136, %s138
      %p145 = scmp.eq.s32.totalorder %s23, 1
      %p146 = por %p144, %p145
      %p147 = scmp.ne.s32.totalorder %s138, %s139
      %p148 = scmp.eq.s32.totalorder %s23, 0
      %p149 = por %p147, %p148
      %p150 = scmp.ne.s32.totalorder %s138, %s139
      %p151 = scmp.eq.s32.totalorder %s24, 1
      %p152 = por %p150, %p151
      %p154 = scmp.ne.s32.totalorder %s139, %s153
      %p155 = scmp.eq.s32.totalorder %s24, 0
      %p156 = por %p154, %p155
      %s158 = sadd.s32 %s157, 1
      %p161 = scmp.eq.s32.totalorder %s18, 1
      %p162 = scmp.ne.s32.totalorder %s157, %s159
      %p163 = scmp.eq.s32.totalorder %s18, 0
      %p164 = por %p162, %p163
      %p165 = scmp.ne.s32.totalorder %s157, %s159
      %p166 = scmp.eq.s32.totalorder %s23, 1
      %p167 = por %p165, %p166
      %p168 = scmp.ne.s32.totalorder %s159, %s160
      %p169 = scmp.eq.s32.totalorder %s23, 0
      %p170 = por %p168, %p169
      %p171 = scmp.ne.s32.totalorder %s159, %s160
      %p172 = scmp.eq.s32.totalorder %s24, 1
      %p173 = por %p171, %p172
      %p175 = scmp.ne.s32.totalorder %s160, %s174
      %p176 = scmp.eq.s32.totalorder %s24, 0
      %p177 = por %p175, %p176
      %s179 = sadd.s32 %s178, 1
      %p182 = scmp.eq.s32.totalorder %s18, 1
      %p183 = scmp.ne.s32.totalorder %s178, %s180
      %p184 = scmp.eq.s32.totalorder %s18, 0
      %p185 = por %p183, %p184
      %p186 = scmp.ne.s32.totalorder %s178, %s180
      %p187 = scmp.eq.s32.totalorder %s23, 1
      %p188 = por %p186, %p187
      %p189 = scmp.ne.s32.totalorder %s180, %s181
      %p190 = scmp.eq.s32.totalorder %s23, 0
      %p191 = por %p189, %p190
      %p192 = scmp.ne.s32.totalorder %s180, %s181
      %p193 = scmp.eq.s32.totalorder %s24, 1
      %p194 = por %p192, %p193
      %p196 = scmp.ne.s32.totalorder %s181, %s195
      %p197 = scmp.eq.s32.totalorder %s24, 0
      %p198 = por %p196, %p197
      %s200 = sadd.s32 %s199, 1
      %p203 = scmp.eq.s32.totalorder %s18, 1
      %p204 = scmp.ne.s32.totalorder %s199, %s201
      %p205 = scmp.eq.s32.totalorder %s18, 0
      %p206 = por %p204, %p205
      %p207 = scmp.ne.s32.totalorder %s199, %s201
      %p208 = scmp.eq.s32.totalorder %s23, 1
      %p209 = por %p207, %p208
      %p210 = scmp.ne.s32.totalorder %s201, %s202
      %p211 = scmp.eq.s32.totalorder %s23, 0
      %p212 = por %p210, %p211
      %p213 = scmp.ne.s32.totalorder %s201, %s202
      %p214 = scmp.eq.s32.totalorder %s24, 1
      %p215 = por %p213, %p214
      %p217 = scmp.ne.s32.totalorder %s202, %s216
      %p218 = scmp.eq.s32.totalorder %s24, 0
      %p219 = por %p217, %p218
      %s220 = ssub.s32 %s18, %s25
      %p221 = scmp.eq.s32.totalorder %s220, 0
      %s223 = sadd.s32 %s222, 1
      %s224 = scalar_select %p221, %s222, %s223
      %p227 = pneg %p221
      %p228 = scmp.eq.s32.totalorder %s18, 1
      %p229 = por %p227, %p228
      %p230 = scmp.ne.s32.totalorder %s222, %s225
      %p231 = scmp.eq.s32.totalorder %s18, 0
      %p232 = por %p230, %p231
      %p233 = scmp.ne.s32.totalorder %s222, %s225
      %p234 = scmp.eq.s32.totalorder %s23, 1
      %p235 = por %p233, %p234
      %p236 = scmp.ne.s32.totalorder %s225, %s226
      %p237 = scmp.eq.s32.totalorder %s23, 0
      %p238 = por %p236, %p237
      %p239 = scmp.ne.s32.totalorder %s225, %s226
      %p240 = scmp.eq.s32.totalorder %s24, 1
      %p241 = por %p239, %p240
      %p243 = scmp.ne.s32.totalorder %s226, %s242
      %p244 = scmp.eq.s32.totalorder %s24, 0
      %p245 = por %p243, %p244
      %p246 = scmp.le.s32.totalorder 1, %s18
      %p247 = scmp.lt.s32.totalorder %s18, 3
      %p248 = pnand %p246, %p247
      %p249 = pneg %p248
      // Predicated region
      $region9: #{fcn_forward.1} parent=5 // pred_check
        _
      $region10: #{fcn_forward.1} parent=5 // pred_check_branch
        %251 = sbr.rel (%p248) target = $region12
      $region11: #{fcn_forward.1} parent=5 // pred_region
        %s252 = ssub.s32 %s18, 1
        // Predicated region
        $region13: #{fcn_forward.1} parent=11 // pred_check
          %p253 = pneg %p65
        $region14: #{fcn_forward.1} parent=11 // pred_check_branch
          %255 = sbr.rel (%p253) target = $region16
        $region15: #{fcn_forward.1} parent=11 // pred_region
          _
        $region16: #{fcn_forward.1} parent=11 // pred_fallthru
          _
        // Predicated region
        $region17: #{fcn_forward.1} parent=11 // pred_check
          %p256 = pneg %p86
        $region18: #{fcn_forward.1} parent=11 // pred_check_branch
          %258 = sbr.rel (%p256) target = $region20
        $region19: #{fcn_forward.1} parent=11 // pred_region
          _
        $region20: #{fcn_forward.1} parent=11 // pred_fallthru
          _
        // Predicated region
        $region21: #{fcn_forward.1} parent=11 // pred_check
          %p259 = pneg %p107
        $region22: #{fcn_forward.1} parent=11 // pred_check_branch
          %261 = sbr.rel (%p259) target = $region24
        $region23: #{fcn_forward.1} parent=11 // pred_region
          _
        $region24: #{fcn_forward.1} parent=11 // pred_fallthru
          _
        // Predicated region
        $region25: #{fcn_forward.1} parent=11 // pred_check
          %p262 = pneg %p128
        $region26: #{fcn_forward.1} parent=11 // pred_check_branch
          %264 = sbr.rel (%p262) target = $region28
        $region27: #{fcn_forward.1} parent=11 // pred_region
          _
        $region28: #{fcn_forward.1} parent=11 // pred_fallthru
          _
        // Predicated region
        $region29: #{fcn_forward.1} parent=11 // pred_check
          %p265 = pneg %p149
        $region30: #{fcn_forward.1} parent=11 // pred_check_branch
          %267 = sbr.rel (%p265) target = $region32
        $region31: #{fcn_forward.1} parent=11 // pred_region
          _
        $region32: #{fcn_forward.1} parent=11 // pred_fallthru
          _
        // Predicated region
        $region33: #{fcn_forward.1} parent=11 // pred_check
          %p268 = pneg %p170
        $region34: #{fcn_forward.1} parent=11 // pred_check_branch
          %270 = sbr.rel (%p268) target = $region36
        $region35: #{fcn_forward.1} parent=11 // pred_region
          _
        $region36: #{fcn_forward.1} parent=11 // pred_fallthru
          _
        // Predicated region
        $region37: #{fcn_forward.1} parent=11 // pred_check
          %p271 = pneg %p191
        $region38: #{fcn_forward.1} parent=11 // pred_check_branch
          %273 = sbr.rel (%p271) target = $region40
        $region39: #{fcn_forward.1} parent=11 // pred_region
          _
        $region40: #{fcn_forward.1} parent=11 // pred_fallthru
          _
        // Predicated region
        $region41: #{fcn_forward.1} parent=11 // pred_check
          %p274 = pneg %p212
        $region42: #{fcn_forward.1} parent=11 // pred_check_branch
          %276 = sbr.rel (%p274) target = $region44
        $region43: #{fcn_forward.1} parent=11 // pred_region
          _
        $region44: #{fcn_forward.1} parent=11 // pred_fallthru
          _
      $region12: #{fcn_forward.1} parent=5 // pred_fallthru
        _
      %p277 = scmp.lt.s32.totalorder %s18, 2
      // Predicated region
      $region45: #{fcn_forward.1} parent=5 // pred_check
        %p278 = pneg %p277
      $region46: #{fcn_forward.1} parent=5 // pred_check_branch
        %280 = sbr.rel (%p278) target = $region48
      $region47: #{fcn_forward.1} parent=5 // pred_region
        // Predicated region
        $region49: #{fcn_forward.1} parent=47 // pred_check
          %p281 = pneg %p38
        $region50: #{fcn_forward.1} parent=47 // pred_check_branch
          %283 = sbr.rel (%p281) target = $region52
        $region51: #{fcn_forward.1} parent=47 // pred_region
          %p284 = scmp.lt.s32.totalorder %s18, 1
          %s285 = scalar_select %p284, %s18, 1
          %s286 = smul.addr %s285, 8
          %s287 = smul.addr %s286, 8
          %s288 = scalar_lea.vmem %s0, %s287
        $region52: #{fcn_forward.1} parent=47 // pred_fallthru
          _
      $region48: #{fcn_forward.1} parent=5 // pred_fallthru
        _
      %p289 = scmp.le.s32.totalorder 1, %s18
      %p290 = scmp.lt.s32.totalorder %s18, 3
      %p291 = pnand %p289, %p290
      %p292 = pneg %p291
      // Predicated region
      $region53: #{fcn_forward.1} parent=5 // pred_check
        _
      $region54: #{fcn_forward.1} parent=5 // pred_check_branch
        %294 = sbr.rel (%p291) target = $region56
      $region55: #{fcn_forward.1} parent=5 // pred_region
        %s295 = ssub.s32 %s18, 1
        %p296 = scmp.lt.s32.totalorder %s23, 1
        %s297 = scalar_select %p296, %s23, 1
        %s298 = smul.addr %s297, 8
        %s299 = smul.addr %s298, 8
        %s300 = scalar_lea.vmem %s0, %s299
        %p301 = pneg %p44
        %p302 = pneg %p41
        %p303 = pneg %p65
        %p304 = pneg %p62
        %p305 = pneg %p86
        %p306 = pneg %p83
        %p307 = pneg %p107
        %p308 = pneg %p104
        %p309 = pneg %p128
        %p310 = pneg %p125
        %p311 = pneg %p149
        %p312 = pneg %p146
        %p313 = pneg %p170
        %p314 = pneg %p167
        %p315 = pneg %p191
        %p316 = pneg %p188
        %p317 = pneg %p212
        %p318 = pneg %p209
        %p319 = pneg %p238
        %p320 = pneg %p235
        %s321 = sand.u32 %s225, 1
        %s322 = scalar_lea.sflag [#allocation6], %s321
        %s323 = sand.u32 %s225, 1
        %s324 = scalar_lea.vmem [#allocation5], %s323
        %p325 = scmp.lt.s32.totalorder %s23, 1
        %s326 = scalar_select %p325, %s23, 1
        %s327 = smul.addr %s326, 8
        %s328 = smul.addr %s327, 8
        %s329 = scalar_lea.vmem %s0, %s328
        %vm330 = vcmask 130048
        %331 = vst.msk [vmem:[#allocation2] sm:$0xff] %vm330, 0.0
        %vm332 = vcmask 123904
        %333 = vst.msk [vmem:[#allocation2 + $0x8] sm:$0x3] %vm332, 0.0
        %334 = vst.msk [vmem:[#allocation2 + $0x10] sm:$0xff] %vm330, 0.0
        %335 = vst.msk [vmem:[#allocation2 + $0x18] sm:$0x3] %vm332, 0.0
        %336 = vst.msk [vmem:[#allocation2 + $0x20] sm:$0xff] %vm330, 0.0
        %337 = vst.msk [vmem:[#allocation2 + $0x28] sm:$0x3] %vm332, 0.0
        %338 = vst.msk [vmem:[#allocation2 + $0x30] sm:$0xff] %vm330, 0.0
        %339 = vst.msk [vmem:[#allocation2 + $0x38] sm:$0x3] %vm332, 0.0
        %340 = vst.msk [vmem:[#allocation2 + $0x40] sm:$0xff] %vm330, 0.0
        %341 = vst.msk [vmem:[#allocation2 + $0x48] sm:$0x3] %vm332, 0.0
        %342 = vst.msk [vmem:[#allocation2 + $0x50] sm:$0xff] %vm330, 0.0
        %343 = vst.msk [vmem:[#allocation2 + $0x58] sm:$0x3] %vm332, 0.0
        %344 = vst.msk [vmem:[#allocation2 + $0x60] sm:$0xff] %vm330, 0.0
        %345 = vst.msk [vmem:[#allocation2 + $0x68] sm:$0x3] %vm332, 0.0
        %346 = vst.msk [vmem:[#allocation2 + $0x70] sm:$0xff] %vm330, 0.0
        %347 = vst.msk [vmem:[#allocation2 + $0x78] sm:$0x3] %vm332, 0.0
        %348 = vst.msk [vmem:[#allocation2 + $0x80] sm:$0xff] %vm330, 0.0
        %349 = vst.msk [vmem:[#allocation2 + $0x88] sm:$0x3] %vm332, 0.0
        %350 = vst.msk [vmem:[#allocation2 + $0x90] sm:$0xff] %vm330, 0.0
        %351 = vst.msk [vmem:[#allocation2 + $0x98] sm:$0x3] %vm332, 0.0
        %vm352 = vcmask 261120
        %353 = vst.msk [vmem:[#allocation3] sm:$0xff] %vm352, 0.0
        %vm354 = vcmask 254976
        %355 = vst.msk [vmem:[#allocation3 + $0x8] sm:$0x3] %vm354, 0.0
        %356 = vst.msk [vmem:[#allocation3 + $0x10] sm:$0xff] %vm352, 0.0
        %357 = vst.msk [vmem:[#allocation3 + $0x18] sm:$0x3] %vm354, 0.0
        %358 = vst.msk [vmem:[#allocation3 + $0x20] sm:$0xff] %vm352, 0.0
        %359 = vst.msk [vmem:[#allocation3 + $0x28] sm:$0x3] %vm354, 0.0
        %360 = vst.msk [vmem:[#allocation3 + $0x30] sm:$0xff] %vm352, 0.0
        %361 = vst.msk [vmem:[#allocation3 + $0x38] sm:$0x3] %vm354, 0.0
        %362 = vst.msk [vmem:[#allocation3 + $0x40] sm:$0xff] %vm352, 0.0
        %363 = vst.msk [vmem:[#allocation3 + $0x48] sm:$0x3] %vm354, 0.0
        %364 = vst.msk [vmem:[#allocation3 + $0x50] sm:$0xff] %vm352, 0.0
        %365 = vst.msk [vmem:[#allocation3 + $0x58] sm:$0x3] %vm354, 0.0
        %366 = vst.msk [vmem:[#allocation3 + $0x60] sm:$0xff] %vm352, 0.0
        %367 = vst.msk [vmem:[#allocation3 + $0x68] sm:$0x3] %vm354, 0.0
        %368 = vst.msk [vmem:[#allocation3 + $0x70] sm:$0xff] %vm352, 0.0
        %369 = vst.msk [vmem:[#allocation3 + $0x78] sm:$0x3] %vm354, 0.0
        %370 = vst.msk [vmem:[#allocation3 + $0x80] sm:$0xff] %vm352, 0.0
        %371 = vst.msk [vmem:[#allocation3 + $0x88] sm:$0x3] %vm354, 0.0
        %372 = vst.msk [vmem:[#allocation3 + $0x90] sm:$0xff] %vm352, 0.0
        %373 = vst.msk [vmem:[#allocation3 + $0x98] sm:$0x3] %vm354, 0.0
        %v374 = vld [vmem:[%s329] sm:$0xff]
        %v375 = vld [vmem:[%s329 + $0x8] sm:$0xff]
        %v376 = vld [vmem:[%s329 + $0x10] sm:$0xff]
        %v377 = vld [vmem:[%s329 + $0x18] sm:$0xff]
        %v378 = vld [vmem:[%s329 + $0x20] sm:$0xff]
        %v379 = vld [vmem:[%s329 + $0x28] sm:$0xff]
        %v380 = vld [vmem:[%s329 + $0x30] sm:$0xff]
        %v381 = vld [vmem:[%s329 + $0x38] sm:$0xff]
        %s382 = scalar_lea.vmem [#allocation2], 16
        %383 = vst.msk [vmem:[%s382 + $0x1] sm:$0xff] %vm330, %v374
        %384 = vst.msk [vmem:[%s382 + $0x11] sm:$0xff] %vm330, %v375
        %385 = vst.msk [vmem:[%s382 + $0x21] sm:$0xff] %vm330, %v376
        %386 = vst.msk [vmem:[%s382 + $0x31] sm:$0xff] %vm330, %v377
        %387 = vst.msk [vmem:[%s382 + $0x41] sm:$0xff] %vm330, %v378
        %388 = vst.msk [vmem:[%s382 + $0x51] sm:$0xff] %vm330, %v379
        %389 = vst.msk [vmem:[%s382 + $0x61] sm:$0xff] %vm330, %v380
        %390 = vst.msk [vmem:[%s382 + $0x71] sm:$0xff] %vm330, %v381
        %v391 = vld [vmem:[%s382 + $0x1] sm:$0xff]
        %v392 = vld [vmem:[%s382 + $0x11] sm:$0xff]
        %v393 = vld [vmem:[%s382 + $0x21] sm:$0xff]
        %v394 = vld [vmem:[%s382 + $0x31] sm:$0xff]
        %v395 = vld [vmem:[%s382 + $0x41] sm:$0xff]
        %v396 = vld [vmem:[%s382 + $0x51] sm:$0xff]
        %v397 = vld [vmem:[%s382 + $0x61] sm:$0xff]
        %v398 = vld [vmem:[%s382 + $0x71] sm:$0xff]
        %399 = vst.msk [vmem:[#allocation4] sm:$0xff] %vm330, %v391
        %400 = vst.msk [vmem:[#allocation4 + $0x18] sm:$0xff] %vm330, %v392
        %401 = vst.msk [vmem:[#allocation4 + $0x30] sm:$0xff] %vm330, %v393
        %402 = vst.msk [vmem:[#allocation4 + $0x48] sm:$0xff] %vm330, %v394
        %403 = vst.msk [vmem:[#allocation4 + $0x60] sm:$0xff] %vm330, %v395
        %404 = vst.msk [vmem:[#allocation4 + $0x78] sm:$0xff] %vm330, %v396
        %405 = vst.msk [vmem:[#allocation4 + $0x90] sm:$0xff] %vm330, %v397
        %406 = vst.msk [vmem:[#allocation4 + $0xa8] sm:$0xff] %vm330, %v398
        %v407 = vld [vmem:[%s382] sm:$0xff]
        %v408 = vld [vmem:[%s382 + $0x10] sm:$0xff]
        %v409 = vld [vmem:[%s382 + $0x20] sm:$0xff]
        %v410 = vld [vmem:[%s382 + $0x30] sm:$0xff]
        %v411 = vld [vmem:[%s382 + $0x40] sm:$0xff]
        %v412 = vld [vmem:[%s382 + $0x50] sm:$0xff]
        %v413 = vld [vmem:[%s382 + $0x60] sm:$0xff]
        %v414 = vld [vmem:[%s382 + $0x70] sm:$0xff]
        %423 = vrot.lane.b32.xlu0 %v407, 16
        %v424 = vpop.permute.xlu0 %423
        %425 = vrot.lane.b32.xlu0 %v408, 16
        %v426 = vpop.permute.xlu0 %425
        %427 = vrot.lane.b32.xlu0 %v409, 16
        %v428 = vpop.permute.xlu0 %427
        %429 = vrot.lane.b32.xlu0 %v410, 16
        %v430 = vpop.permute.xlu0 %429
        %431 = vrot.lane.b32.xlu0 %v411, 16
        %v432 = vpop.permute.xlu0 %431
        %433 = vrot.lane.b32.xlu0 %v412, 16
        %v434 = vpop.permute.xlu0 %433
        %435 = vrot.lane.b32.xlu0 %v413, 16
        %v436 = vpop.permute.xlu0 %435
        %437 = vrot.lane.b32.xlu0 %v414, 16
        %v438 = vpop.permute.xlu0 %437
        %vm447 = vcmask 261248
        %448 = vst.msk [vmem:[#allocation4] sm:$0xff] %vm447, %v424
        %449 = vst.msk [vmem:[#allocation4 + $0x18] sm:$0xff] %vm447, %v426
        %450 = vst.msk [vmem:[#allocation4 + $0x30] sm:$0xff] %vm447, %v428
        %451 = vst.msk [vmem:[#allocation4 + $0x48] sm:$0xff] %vm447, %v430
        %452 = vst.msk [vmem:[#allocation4 + $0x60] sm:$0xff] %vm447, %v432
        %453 = vst.msk [vmem:[#allocation4 + $0x78] sm:$0xff] %vm447, %v434
        %454 = vst.msk [vmem:[#allocation4 + $0x90] sm:$0xff] %vm447, %v436
        %455 = vst.msk [vmem:[#allocation4 + $0xa8] sm:$0xff] %vm447, %v438
        %v456 = vld [vmem:[#allocation2 + $0x1] sm:$0xff]
        %v457 = vld [vmem:[#allocation2 + $0x11] sm:$0xff]
        %v458 = vld [vmem:[#allocation2 + $0x21] sm:$0xff]
        %v459 = vld [vmem:[#allocation2 + $0x31] sm:$0xff]
        %v460 = vld [vmem:[#allocation2 + $0x41] sm:$0xff]
        %v461 = vld [vmem:[#allocation2 + $0x51] sm:$0xff]
        %v462 = vld [vmem:[#allocation2 + $0x61] sm:$0xff]
        %v463 = vld [vmem:[#allocation2 + $0x71] sm:$0xff]
        %472 = vrot.lane.b32.xlu0 %v456, 32
        %v473 = vpop.permute.xlu0 %472
        %474 = vrot.lane.b32.xlu0 %v457, 32
        %v475 = vpop.permute.xlu0 %474
        %476 = vrot.lane.b32.xlu0 %v458, 32
        %v477 = vpop.permute.xlu0 %476
        %478 = vrot.lane.b32.xlu0 %v459, 32
        %v479 = vpop.permute.xlu0 %478
        %480 = vrot.lane.b32.xlu0 %v460, 32
        %v481 = vpop.permute.xlu0 %480
        %482 = vrot.lane.b32.xlu0 %v461, 32
        %v483 = vpop.permute.xlu0 %482
        %484 = vrot.lane.b32.xlu0 %v462, 32
        %v485 = vpop.permute.xlu0 %484
        %486 = vrot.lane.b32.xlu0 %v463, 32
        %v487 = vpop.permute.xlu0 %486
        %vm496 = vcmask 392448
        %497 = vst.msk [vmem:[#allocation4] sm:$0xff] %vm496, %v473
        %498 = vst.msk [vmem:[#allocation4 + $0x18] sm:$0xff] %vm496, %v475
        %499 = vst.msk [vmem:[#allocation4 + $0x30] sm:$0xff] %vm496, %v477
        %500 = vst.msk [vmem:[#allocation4 + $0x48] sm:$0xff] %vm496, %v479
        %501 = vst.msk [vmem:[#allocation4 + $0x60] sm:$0xff] %vm496, %v481
        %502 = vst.msk [vmem:[#allocation4 + $0x78] sm:$0xff] %vm496, %v483
        %503 = vst.msk [vmem:[#allocation4 + $0x90] sm:$0xff] %vm496, %v485
        %504 = vst.msk [vmem:[#allocation4 + $0xa8] sm:$0xff] %vm496, %v487
        %v505 = vld [vmem:[#allocation2] sm:$0xff]
        %v506 = vld [vmem:[#allocation2 + $0x10] sm:$0xff]
        %v507 = vld [vmem:[#allocation2 + $0x20] sm:$0xff]
        %v508 = vld [vmem:[#allocation2 + $0x30] sm:$0xff]
        %v509 = vld [vmem:[#allocation2 + $0x40] sm:$0xff]
        %v510 = vld [vmem:[#allocation2 + $0x50] sm:$0xff]
        %v511 = vld [vmem:[#allocation2 + $0x60] sm:$0xff]
        %v512 = vld [vmem:[#allocation2 + $0x70] sm:$0xff]
        %521 = vrot.lane.b32.xlu0 %v505, 48
        %v522 = vpop.permute.xlu0 %521
        %523 = vrot.lane.b32.xlu0 %v506, 48
        %v524 = vpop.permute.xlu0 %523
        %525 = vrot.lane.b32.xlu0 %v507, 48
        %v526 = vpop.permute.xlu0 %525
        %527 = vrot.lane.b32.xlu0 %v508, 48
        %v528 = vpop.permute.xlu0 %527
        %529 = vrot.lane.b32.xlu0 %v509, 48
        %v530 = vpop.permute.xlu0 %529
        %531 = vrot.lane.b32.xlu0 %v510, 48
        %v532 = vpop.permute.xlu0 %531
        %533 = vrot.lane.b32.xlu0 %v511, 48
        %v534 = vpop.permute.xlu0 %533
        %535 = vrot.lane.b32.xlu0 %v512, 48
        %v536 = vpop.permute.xlu0 %535
        %vm545 = vcmask 523648
        %546 = vst.msk [vmem:[#allocation4] sm:$0xff] %vm545, %v522
        %547 = vst.msk [vmem:[#allocation4 + $0x18] sm:$0xff] %vm545, %v524
        %548 = vst.msk [vmem:[#allocation4 + $0x30] sm:$0xff] %vm545, %v526
        %549 = vst.msk [vmem:[#allocation4 + $0x48] sm:$0xff] %vm545, %v528
        %550 = vst.msk [vmem:[#allocation4 + $0x60] sm:$0xff] %vm545, %v530
        %551 = vst.msk [vmem:[#allocation4 + $0x78] sm:$0xff] %vm545, %v532
        %552 = vst.msk [vmem:[#allocation4 + $0x90] sm:$0xff] %vm545, %v534
        %553 = vst.msk [vmem:[#allocation4 + $0xa8] sm:$0xff] %vm545, %v536
        %v554 = vld [vmem:[#allocation4] sm:$0xff]
        %v555 = vld [vmem:[#allocation4 + $0x18] sm:$0xff]
        %v556 = vld [vmem:[#allocation4 + $0x30] sm:$0xff]
        %v557 = vld [vmem:[#allocation4 + $0x48] sm:$0xff]
        %v558 = vld [vmem:[#allocation4 + $0x60] sm:$0xff]
        %v559 = vld [vmem:[#allocation4 + $0x78] sm:$0xff]
        %v560 = vld [vmem:[#allocation4 + $0x90] sm:$0xff]
        %v561 = vld [vmem:[#allocation4 + $0xa8] sm:$0xff]
        %v562 = vld [vmem:[%s1] sm:$0xff]
        %v563 = vld [vmem:[%s1 + $0x8] sm:$0xff]
        %v564 = vld [vmem:[%s1 + $0x10] sm:$0xff]
        %v565 = vld [vmem:[%s1 + $0x18] sm:$0xff]
        %v566 = vld [vmem:[%s1 + $0x20] sm:$0xff]
        %v567 = vld [vmem:[%s1 + $0x28] sm:$0xff]
        %v568 = vld [vmem:[%s1 + $0x30] sm:$0xff]
        %v569 = vld [vmem:[%s1 + $0x38] sm:$0xff]
        %v570 = vld [vmem:[%s2] sm:$0x1]
        %v572 = vlaneseq
        %v573 = vshrl.u32 %v572, 7
        %v574 = vsub.s32 0, %v573
        %v575 = vrot.slane %v570, %v574
        %vm577 = vcmask 523264
        %v579 = vsel %vm577, %v554, 0
        %v582 = vsel %vm577, %v555, 0
        %v585 = vsel %vm577, %v556, 0
        %v588 = vsel %vm577, %v557, 0
        %v591 = vsel %vm577, %v558, 0
        %v594 = vsel %vm577, %v559, 0
        %v597 = vsel %vm577, %v560, 0
        %v600 = vsel %vm577, %v561, 0
        %602 = vmatprep.subr.mxu0 0.0
        %603 = vmatpush1.msra.mxu0 %v562
        %604 = vmatprep.subr.mxu0 0.0
        %605 = vmatpush1.msra.mxu0 %v563
        %606 = vmatprep.subr.mxu0 0.0
        %607 = vmatpush1.msra.mxu0 %v564
        %608 = vmatprep.subr.mxu0 0.0
        %609 = vmatpush1.msra.mxu0 %v565
        %610 = vmatprep.subr.mxu0 0.0
        %611 = vmatpush1.msra.mxu0 %v566
        %612 = vmatprep.subr.mxu0 0.0
        %613 = vmatpush1.msra.mxu0 %v567
        %614 = vmatprep.subr.mxu0 0.0
        %615 = vmatpush1.msra.mxu0 %v568
        %616 = vmatprep.subr.mxu0 0.0
        %617 = vmatpush1.msra.mxu0 %v569
        %618 = vmatprep.subr.mxu0 0.0
        %619 = vmatpush1.msra.mxu0 0.0
        %620 = vmatprep.subr.mxu0 0.0
        %621 = vmatpush1.msra.mxu0 0.0
        %622 = vmatprep.subr.mxu0 0.0
        %623 = vmatpush1.msra.mxu0 0.0
        %624 = vmatprep.subr.mxu0 0.0
        %625 = vmatpush1.msra.mxu0 0.0
        %626 = vmatprep.subr.mxu0 0.0
        %627 = vmatpush1.msra.mxu0 0.0
        %628 = vmatprep.subr.mxu0 0.0
        %629 = vmatpush1.msra.mxu0 0.0
        %630 = vmatprep.subr.mxu0 0.0
        %631 = vmatpush1.msra.mxu0 0.0
        %632 = vmatprep.subr.mxu0 0.0
        %633 = vmatpush1.msra.mxu0 0.0
        %634 = vmatprep.subr.mxu0 0.0
        %635 = vmatpush1.msra.mxu0 0.0
        %636 = vmatprep.subr.mxu0 0.0
        %637 = vmatpush1.msra.mxu0 0.0
        %638 = vmatprep.subr.mxu0 0.0
        %639 = vmatpush1.msra.mxu0 0.0
        %640 = vmatprep.subr.mxu0 0.0
        %641 = vmatpush1.msra.mxu0 0.0
        %642 = vmatprep.subr.mxu0 0.0
        %643 = vmatpush1.msra.mxu0 0.0
        %644 = vmatprep.subr.mxu0 0.0
        %645 = vmatpush1.msra.mxu0 0.0
        %646 = vmatprep.subr.mxu0 0.0
        %647 = vmatpush1.msra.mxu0 0.0
        %648 = vmatprep.subr.mxu0 0.0
        %649 = vmatpush1.msra.mxu0 0.0
        %650 = vmatprep.subr.mxu0 0.0
        %651 = vmatpush1.msra.mxu0 0.0
        %652 = vmatprep.subr.mxu0 0.0
        %653 = vmatpush1.msra.mxu0 0.0
        %654 = vmatprep.subr.mxu0 0.0
        %655 = vmatpush1.msra.mxu0 0.0
        %656 = vmatprep.subr.mxu0 0.0
        %657 = vmatpush1.msra.mxu0 0.0
        %658 = vmatprep.subr.mxu0 0.0
        %659 = vmatpush1.msra.mxu0 0.0
        %660 = vmatprep.subr.mxu0 0.0
        %661 = vmatpush1.msra.mxu0 0.0
        %662 = vmatprep.subr.mxu0 0.0
        %663 = vmatpush1.msra.mxu0 0.0
        %664 = vmatprep.subr.mxu0 0.0
        %665 = vmatpush1.msra.mxu0 0.0
        %666 = vmatprep.mubr.f32.mxu0 0.0
        %667 = vmatmul.mubr.f32.gmra.mrb[0].mxu0 %v579
        %v668 = vpop.f32.mrb[0].mxu0
        %v669 = vadd.f32 %v575, %v668
        %v670 = vpop.f32.mrb[0].mxu0
        %671 = vmatprep.mubr.f32.mxu0 0.0
        %672 = vmatmul.mubr.f32.gmra.mrb[0].mxu0 %v582
        %v673 = vpop.f32.mrb[0].mxu0
        %v674 = vadd.f32 %v575, %v673
        %v675 = vpop.f32.mrb[0].mxu0
        %676 = vmatprep.mubr.f32.mxu0 0.0
        %677 = vmatmul.mubr.f32.gmra.mrb[0].mxu0 %v585
        %v678 = vpop.f32.mrb[0].mxu0
        %v679 = vadd.f32 %v575, %v678
        %v680 = vpop.f32.mrb[0].mxu0
        %681 = vmatprep.mubr.f32.mxu0 0.0
        %682 = vmatmul.mubr.f32.gmra.mrb[0].mxu0 %v588
        %v683 = vpop.f32.mrb[0].mxu0
        %v684 = vadd.f32 %v575, %v683
        %v685 = vpop.f32.mrb[0].mxu0
        %686 = vmatprep.mubr.f32.mxu0 0.0
        %687 = vmatmul.mubr.f32.gmra.mrb[0].mxu0 %v591
        %v688 = vpop.f32.mrb[0].mxu0
        %v689 = vadd.f32 %v575, %v688
        %v690 = vpop.f32.mrb[0].mxu0
        %691 = vmatprep.mubr.f32.mxu0 0.0
        %692 = vmatmul.mubr.f32.gmra.mrb[0].mxu0 %v594
        %v693 = vpop.f32.mrb[0].mxu0
        %v694 = vadd.f32 %v575, %v693
        %v695 = vpop.f32.mrb[0].mxu0
        %696 = vmatprep.mubr.f32.mxu0 0.0
        %697 = vmatmul.mubr.f32.gmra.mrb[0].mxu0 %v597
        %v698 = vpop.f32.mrb[0].mxu0
        %v699 = vadd.f32 %v575, %v698
        %v700 = vpop.f32.mrb[0].mxu0
        %701 = vmatprep.mubr.f32.mxu0 0.0
        %702 = vmatmul.mubr.f32.gmra.mrb[0].mxu0 %v600
        %v703 = vpop.f32.mrb[0].mxu0
        %v704 = vadd.f32 %v575, %v703
        %v705 = vpop.f32.mrb[0].mxu0
        %706 = vdwg.mxu0
        %v707 = vmax.f32 %v669, 0.0
        %v708 = vmax.f32 %v674, 0.0
        %v709 = vmax.f32 %v679, 0.0
        %v710 = vmax.f32 %v684, 0.0
        %v711 = vmax.f32 %v689, 0.0
        %v712 = vmax.f32 %v694, 0.0
        %v713 = vmax.f32 %v699, 0.0
        %v714 = vmax.f32 %v704, 0.0
        %s715 = scalar_lea.vmem [#allocation3], 16
        %716 = vst.msk [vmem:[%s715 + $0x1] sm:$0xff] %vm352, %v707
        %717 = vst.msk [vmem:[%s715 + $0x11] sm:$0xff] %vm352, %v708
        %718 = vst.msk [vmem:[%s715 + $0x21] sm:$0xff] %vm352, %v709
        %719 = vst.msk [vmem:[%s715 + $0x31] sm:$0xff] %vm352, %v710
        %720 = vst.msk [vmem:[%s715 + $0x41] sm:$0xff] %vm352, %v711
        %721 = vst.msk [vmem:[%s715 + $0x51] sm:$0xff] %vm352, %v712
        %722 = vst.msk [vmem:[%s715 + $0x61] sm:$0xff] %vm352, %v713
        %723 = vst.msk [vmem:[%s715 + $0x71] sm:$0xff] %vm352, %v714
        %v724 = vld [vmem:[#allocation3] sm:$0xff]
        %v725 = vld [vmem:[#allocation3 + $0x10] sm:$0xff]
        %v726 = vld [vmem:[#allocation3 + $0x20] sm:$0xff]
        %v727 = vld [vmem:[#allocation3 + $0x30] sm:$0xff]
        %v728 = vld [vmem:[#allocation3 + $0x40] sm:$0xff]
        %v729 = vld [vmem:[#allocation3 + $0x50] sm:$0xff]
        %v730 = vld [vmem:[#allocation3 + $0x60] sm:$0xff]
        %v731 = vld [vmem:[#allocation3 + $0x70] sm:$0xff]
        %732 = vst.msk [vmem:[#allocation4] sm:$0xff] %vm352, %v724
        %733 = vst.msk [vmem:[#allocation4 + $0x18] sm:$0xff] %vm352, %v725
        %734 = vst.msk [vmem:[#allocation4 + $0x30] sm:$0xff] %vm352, %v726
        %735 = vst.msk [vmem:[#allocation4 + $0x48] sm:$0xff] %vm352, %v727
        %736 = vst.msk [vmem:[#allocation4 + $0x60] sm:$0xff] %vm352, %v728
        %737 = vst.msk [vmem:[#allocation4 + $0x78] sm:$0xff] %vm352, %v729
        %738 = vst.msk [vmem:[#allocation4 + $0x90] sm:$0xff] %vm352, %v730
        %739 = vst.msk [vmem:[#allocation4 + $0xa8] sm:$0xff] %vm352, %v731
        %v740 = vld [vmem:[#allocation3 + $0x1] sm:$0xff]
        %v741 = vld [vmem:[#allocation3 + $0x11] sm:$0xff]
        %v742 = vld [vmem:[#allocation3 + $0x21] sm:$0xff]
        %v743 = vld [vmem:[#allocation3 + $0x31] sm:$0xff]
        %v744 = vld [vmem:[#allocation3 + $0x41] sm:$0xff]
        %v745 = vld [vmem:[#allocation3 + $0x51] sm:$0xff]
        %v746 = vld [vmem:[#allocation3 + $0x61] sm:$0xff]
        %v747 = vld [vmem:[#allocation3 + $0x71] sm:$0xff]
        %756 = vrot.lane.b32.xlu0 %v740, 32
        %v757 = vpop.permute.xlu0 %756
        %758 = vrot.lane.b32.xlu0 %v741, 32
        %v759 = vpop.permute.xlu0 %758
        %760 = vrot.lane.b32.xlu0 %v742, 32
        %v761 = vpop.permute.xlu0 %760
        %762 = vrot.lane.b32.xlu0 %v743, 32
        %v763 = vpop.permute.xlu0 %762
        %764 = vrot.lane.b32.xlu0 %v744, 32
        %v765 = vpop.permute.xlu0 %764
        %766 = vrot.lane.b32.xlu0 %v745, 32
        %v767 = vpop.permute.xlu0 %766
        %768 = vrot.lane.b32.xlu0 %v746, 32
        %v769 = vpop.permute.xlu0 %768
        %770 = vrot.lane.b32.xlu0 %v747, 32
        %v771 = vpop.permute.xlu0 %770
        %vm780 = vcmask 523520
        %781 = vst.msk [vmem:[#allocation4] sm:$0xff] %vm780, %v757
        %782 = vst.msk [vmem:[#allocation4 + $0x18] sm:$0xff] %vm780, %v759
        %783 = vst.msk [vmem:[#allocation4 + $0x30] sm:$0xff] %vm780, %v761
        %784 = vst.msk [vmem:[#allocation4 + $0x48] sm:$0xff] %vm780, %v763
        %785 = vst.msk [vmem:[#allocation4 + $0x60] sm:$0xff] %vm780, %v765
        %786 = vst.msk [vmem:[#allocation4 + $0x78] sm:$0xff] %vm780, %v767
        %787 = vst.msk [vmem:[#allocation4 + $0x90] sm:$0xff] %vm780, %v769
        %788 = vst.msk [vmem:[#allocation4 + $0xa8] sm:$0xff] %vm780, %v771
        %v789 = vld [vmem:[#allocation3 + $0x2] sm:$0xff]
        %v790 = vld [vmem:[#allocation3 + $0x12] sm:$0xff]
        %v791 = vld [vmem:[#allocation3 + $0x22] sm:$0xff]
        %v792 = vld [vmem:[#allocation3 + $0x32] sm:$0xff]
        %v793 = vld [vmem:[#allocation3 + $0x42] sm:$0xff]
        %v794 = vld [vmem:[#allocation3 + $0x52] sm:$0xff]
        %v795 = vld [vmem:[#allocation3 + $0x62] sm:$0xff]
        %v796 = vld [vmem:[#allocation3 + $0x72] sm:$0xff]
        %805 = vrot.lane.b32.xlu0 %v789, 64
        %v806 = vpop.permute.xlu0 %805
        %807 = vrot.lane.b32.xlu0 %v790, 64
        %v808 = vpop.permute.xlu0 %807
        %809 = vrot.lane.b32.xlu0 %v791, 64
        %v810 = vpop.permute.xlu0 %809
        %811 = vrot.lane.b32.xlu0 %v792, 64
        %v812 = vpop.permute.xlu0 %811
        %813 = vrot.lane.b32.xlu0 %v793, 64
        %v814 = vpop.permute.xlu0 %813
        %815 = vrot.lane.b32.xlu0 %v794, 64
        %v816 = vpop.permute.xlu0 %815
        %817 = vrot.lane.b32.xlu0 %v795, 64
        %v818 = vpop.permute.xlu0 %817
        %819 = vrot.lane.b32.xlu0 %v796, 64
        %v820 = vpop.permute.xlu0 %819
        %vm829 = vcmask 785920
        %830 = vst.msk [vmem:[#allocation4] sm:$0xff] %vm829, %v806
        %831 = vst.msk [vmem:[#allocation4 + $0x18] sm:$0xff] %vm829, %v808
        %832 = vst.msk [vmem:[#allocation4 + $0x30] sm:$0xff] %vm829, %v810
        %833 = vst.msk [vmem:[#allocation4 + $0x48] sm:$0xff] %vm829, %v812
        %834 = vst.msk [vmem:[#allocation4 + $0x60] sm:$0xff] %vm829, %v814
        %835 = vst.msk [vmem:[#allocation4 + $0x78] sm:$0xff] %vm829, %v816
        %836 = vst.msk [vmem:[#allocation4 + $0x90] sm:$0xff] %vm829, %v818
        %837 = vst.msk [vmem:[#allocation4 + $0xa8] sm:$0xff] %vm829, %v820
        %v838 = vld [vmem:[%s715] sm:$0xff]
        %v839 = vld [vmem:[%s715 + $0x10] sm:$0xff]
        %v840 = vld [vmem:[%s715 + $0x20] sm:$0xff]
        %v841 = vld [vmem:[%s715 + $0x30] sm:$0xff]
        %v842 = vld [vmem:[%s715 + $0x40] sm:$0xff]
        %v843 = vld [vmem:[%s715 + $0x50] sm:$0xff]
        %v844 = vld [vmem:[%s715 + $0x60] sm:$0xff]
        %v845 = vld [vmem:[%s715 + $0x70] sm:$0xff]
        %854 = vrot.lane.b32.xlu0 %v838, 96
        %v855 = vpop.permute.xlu0 %854
        %856 = vrot.lane.b32.xlu0 %v839, 96
        %v857 = vpop.permute.xlu0 %856
        %858 = vrot.lane.b32.xlu0 %v840, 96
        %v859 = vpop.permute.xlu0 %858
        %860 = vrot.lane.b32.xlu0 %v841, 96
        %v861 = vpop.permute.xlu0 %860
        %862 = vrot.lane.b32.xlu0 %v842, 96
        %v863 = vpop.permute.xlu0 %862
        %864 = vrot.lane.b32.xlu0 %v843, 96
        %v865 = vpop.permute.xlu0 %864
        %866 = vrot.lane.b32.xlu0 %v844, 96
        %v867 = vpop.permute.xlu0 %866
        %868 = vrot.lane.b32.xlu0 %v845, 96
        %v869 = vpop.permute.xlu0 %868
        %vm878 = vcmask 1048320
        %879 = vst.msk [vmem:[#allocation4] sm:$0xff] %vm878, %v855
        %880 = vst.msk [vmem:[#allocation4 + $0x18] sm:$0xff] %vm878, %v857
        %881 = vst.msk [vmem:[#allocation4 + $0x30] sm:$0xff] %vm878, %v859
        %882 = vst.msk [vmem:[#allocation4 + $0x48] sm:$0xff] %vm878, %v861
        %883 = vst.msk [vmem:[#allocation4 + $0x60] sm:$0xff] %vm878, %v863
        %884 = vst.msk [vmem:[#allocation4 + $0x78] sm:$0xff] %vm878, %v865
        %885 = vst.msk [vmem:[#allocation4 + $0x90] sm:$0xff] %vm878, %v867
        %886 = vst.msk [vmem:[#allocation4 + $0xa8] sm:$0xff] %vm878, %v869
        %v887 = vld [vmem:[%s715 + $0x1] sm:$0xff]
        %v888 = vld [vmem:[%s715 + $0x11] sm:$0xff]
        %v889 = vld [vmem:[%s715 + $0x21] sm:$0xff]
        %v890 = vld [vmem:[%s715 + $0x31] sm:$0xff]
        %v891 = vld [vmem:[%s715 + $0x41] sm:$0xff]
        %v892 = vld [vmem:[%s715 + $0x51] sm:$0xff]
        %v893 = vld [vmem:[%s715 + $0x61] sm:$0xff]
        %v894 = vld [vmem:[%s715 + $0x71] sm:$0xff]
        %895 = vst.msk [vmem:[#allocation4 + $0x8] sm:$0xff] %vm352, %v887
        %896 = vst.msk [vmem:[#allocation4 + $0x20] sm:$0xff] %vm352, %v888
        %897 = vst.msk [vmem:[#allocation4 + $0x38] sm:$0xff] %vm352, %v889
        %898 = vst.msk [vmem:[#allocation4 + $0x50] sm:$0xff] %vm352, %v890
        %899 = vst.msk [vmem:[#allocation4 + $0x68] sm:$0xff] %vm352, %v891
        %900 = vst.msk [vmem:[#allocation4 + $0x80] sm:$0xff] %vm352, %v892
        %901 = vst.msk [vmem:[#allocation4 + $0x98] sm:$0xff] %vm352, %v893
        %902 = vst.msk [vmem:[#allocation4 + $0xb0] sm:$0xff] %vm352, %v894
        %v903 = vld [vmem:[%s715 + $0x2] sm:$0xff]
        %v904 = vld [vmem:[%s715 + $0x12] sm:$0xff]
        %v905 = vld [vmem:[%s715 + $0x22] sm:$0xff]
        %v906 = vld [vmem:[%s715 + $0x32] sm:$0xff]
        %v907 = vld [vmem:[%s715 + $0x42] sm:$0xff]
        %v908 = vld [vmem:[%s715 + $0x52] sm:$0xff]
        %v909 = vld [vmem:[%s715 + $0x62] sm:$0xff]
        %v910 = vld [vmem:[%s715 + $0x72] sm:$0xff]
        %919 = vrot.lane.b32.xlu0 %v903, 32
        %v920 = vpop.permute.xlu0 %919
        %921 = vrot.lane.b32.xlu0 %v904, 32
        %v922 = vpop.permute.xlu0 %921
        %923 = vrot.lane.b32.xlu0 %v905, 32
        %v924 = vpop.permute.xlu0 %923
        %925 = vrot.lane.b32.xlu0 %v906, 32
        %v926 = vpop.permute.xlu0 %925
        %927 = vrot.lane.b32.xlu0 %v907, 32
        %v928 = vpop.permute.xlu0 %927
        %929 = vrot.lane.b32.xlu0 %v908, 32
        %v930 = vpop.permute.xlu0 %929
        %931 = vrot.lane.b32.xlu0 %v909, 32
        %v932 = vpop.permute.xlu0 %931
        %933 = vrot.lane.b32.xlu0 %v910, 32
        %v934 = vpop.permute.xlu0 %933
        %943 = vst.msk [vmem:[#allocation4 + $0x8] sm:$0xff] %vm780, %v920
        %944 = vst.msk [vmem:[#allocation4 + $0x20] sm:$0xff] %vm780, %v922
        %945 = vst.msk [vmem:[#allocation4 + $0x38] sm:$0xff] %vm780, %v924
        %946 = vst.msk [vmem:[#allocation4 + $0x50] sm:$0xff] %vm780, %v926
        %947 = vst.msk [vmem:[#allocation4 + $0x68] sm:$0xff] %vm780, %v928
        %948 = vst.msk [vmem:[#allocation4 + $0x80] sm:$0xff] %vm780, %v930
        %949 = vst.msk [vmem:[#allocation4 + $0x98] sm:$0xff] %vm780, %v932
        %950 = vst.msk [vmem:[#allocation4 + $0xb0] sm:$0xff] %vm780, %v934
        %s951 = scalar_lea.vmem [#allocation3], 32
        %v952 = vld [vmem:[%s951] sm:$0xff]
        %v953 = vld [vmem:[%s951 + $0x10] sm:$0xff]
        %v954 = vld [vmem:[%s951 + $0x20] sm:$0xff]
        %v955 = vld [vmem:[%s951 + $0x30] sm:$0xff]
        %v956 = vld [vmem:[%s951 + $0x40] sm:$0xff]
        %v957 = vld [vmem:[%s951 + $0x50] sm:$0xff]
        %v958 = vld [vmem:[%s951 + $0x60] sm:$0xff]
        %v959 = vld [vmem:[%s951 + $0x70] sm:$0xff]
        %968 = vrot.lane.b32.xlu0 %v952, 64
        %v969 = vpop.permute.xlu0 %968
        %970 = vrot.lane.b32.xlu0 %v953, 64
        %v971 = vpop.permute.xlu0 %970
        %972 = vrot.lane.b32.xlu0 %v954, 64
        %v973 = vpop.permute.xlu0 %972
        %974 = vrot.lane.b32.xlu0 %v955, 64
        %v975 = vpop.permute.xlu0 %974
        %976 = vrot.lane.b32.xlu0 %v956, 64
        %v977 = vpop.permute.xlu0 %976
        %978 = vrot.lane.b32.xlu0 %v957, 64
        %v979 = vpop.permute.xlu0 %978
        %980 = vrot.lane.b32.xlu0 %v958, 64
        %v981 = vpop.permute.xlu0 %980
        %982 = vrot.lane.b32.xlu0 %v959, 64
        %v983 = vpop.permute.xlu0 %982
        %992 = vst.msk [vmem:[#allocation4 + $0x8] sm:$0xff] %vm829, %v969
        %993 = vst.msk [vmem:[#allocation4 + $0x20] sm:$0xff] %vm829, %v971
        %994 = vst.msk [vmem:[#allocation4 + $0x38] sm:$0xff] %vm829, %v973
        %995 = vst.msk [vmem:[#allocation4 + $0x50] sm:$0xff] %vm829, %v975
        %996 = vst.msk [vmem:[#allocation4 + $0x68] sm:$0xff] %vm829, %v977
        %997 = vst.msk [vmem:[#allocation4 + $0x80] sm:$0xff] %vm829, %v979
        %998 = vst.msk [vmem:[#allocation4 + $0x98] sm:$0xff] %vm829, %v981
        %999 = vst.msk [vmem:[#allocation4 + $0xb0] sm:$0xff] %vm829, %v983
        %v1000 = vld [vmem:[%s951 + $0x1] sm:$0xff]
        %v1001 = vld [vmem:[%s951 + $0x11] sm:$0xff]
        %v1002 = vld [vmem:[%s951 + $0x21] sm:$0xff]
        %v1003 = vld [vmem:[%s951 + $0x31] sm:$0xff]
        %v1004 = vld [vmem:[%s951 + $0x41] sm:$0xff]
        %v1005 = vld [vmem:[%s951 + $0x51] sm:$0xff]
        %v1006 = vld [vmem:[%s951 + $0x61] sm:$0xff]
        %v1007 = vld [vmem:[%s951 + $0x71] sm:$0xff]
        %1016 = vrot.lane.b32.xlu0 %v1000, 96
        %v1017 = vpop.permute.xlu0 %1016
        %1018 = vrot.lane.b32.xlu0 %v1001, 96
        %v1019 = vpop.permute.xlu0 %1018
        %1020 = vrot.lane.b32.xlu0 %v1002, 96
        %v1021 = vpop.permute.xlu0 %1020
        %1022 = vrot.lane.b32.xlu0 %v1003, 96
        %v1023 = vpop.permute.xlu0 %1022
        %1024 = vrot.lane.b32.xlu0 %v1004, 96
        %v1025 = vpop.permute.xlu0 %1024
        %1026 = vrot.lane.b32.xlu0 %v1005, 96
        %v1027 = vpop.permute.xlu0 %1026
        %1028 = vrot.lane.b32.xlu0 %v1006, 96
        %v1029 = vpop.permute.xlu0 %1028
        %1030 = vrot.lane.b32.xlu0 %v1007, 96
        %v1031 = vpop.permute.xlu0 %1030
        %1040 = vst.msk [vmem:[#allocation4 + $0x8] sm:$0xff] %vm878, %v1017
        %1041 = vst.msk [vmem:[#allocation4 + $0x20] sm:$0xff] %vm878, %v1019
        %1042 = vst.msk [vmem:[#allocation4 + $0x38] sm:$0xff] %vm878, %v1021
        %1043 = vst.msk [vmem:[#allocation4 + $0x50] sm:$0xff] %vm878, %v1023
        %1044 = vst.msk [vmem:[#allocation4 + $0x68] sm:$0xff] %vm878, %v1025
        %1045 = vst.msk [vmem:[#allocation4 + $0x80] sm:$0xff] %vm878, %v1027
        %1046 = vst.msk [vmem:[#allocation4 + $0x98] sm:$0xff] %vm878, %v1029
        %1047 = vst.msk [vmem:[#allocation4 + $0xb0] sm:$0xff] %vm878, %v1031
        %v1048 = vld [vmem:[%s951 + $0x2] sm:$0xff]
        %v1049 = vld [vmem:[%s951 + $0x12] sm:$0xff]
        %v1050 = vld [vmem:[%s951 + $0x22] sm:$0xff]
        %v1051 = vld [vmem:[%s951 + $0x32] sm:$0xff]
        %v1052 = vld [vmem:[%s951 + $0x42] sm:$0xff]
        %v1053 = vld [vmem:[%s951 + $0x52] sm:$0xff]
        %v1054 = vld [vmem:[%s951 + $0x62] sm:$0xff]
        %v1055 = vld [vmem:[%s951 + $0x72] sm:$0xff]
        %1056 = vst.msk [vmem:[#allocation4 + $0x10] sm:$0xff] %vm352, %v1048
        %1057 = vst.msk [vmem:[#allocation4 + $0x28] sm:$0xff] %vm352, %v1049
        %1058 = vst.msk [vmem:[#allocation4 + $0x40] sm:$0xff] %vm352, %v1050
        %1059 = vst.msk [vmem:[#allocation4 + $0x58] sm:$0xff] %vm352, %v1051
        %1060 = vst.msk [vmem:[#allocation4 + $0x70] sm:$0xff] %vm352, %v1052
        %1061 = vst.msk [vmem:[#allocation4 + $0x88] sm:$0xff] %vm352, %v1053
        %1062 = vst.msk [vmem:[#allocation4 + $0xa0] sm:$0xff] %vm352, %v1054
        %1063 = vst.msk [vmem:[#allocation4 + $0xb8] sm:$0xff] %vm352, %v1055
        %v1064 = vld [vmem:[#allocation4] sm:$0xff]
        %v1065 = vld [vmem:[#allocation4 + $0x8] sm:$0xff]
        %v1066 = vld [vmem:[#allocation4 + $0x10] sm:$0xff]
        %v1067 = vld [vmem:[#allocation4 + $0x18] sm:$0xff]
        %v1068 = vld [vmem:[#allocation4 + $0x20] sm:$0xff]
        %v1069 = vld [vmem:[#allocation4 + $0x28] sm:$0xff]
        %v1070 = vld [vmem:[#allocation4 + $0x30] sm:$0xff]
        %v1071 = vld [vmem:[#allocation4 + $0x38] sm:$0xff]
        %v1072 = vld [vmem:[#allocation4 + $0x40] sm:$0xff]
        %v1073 = vld [vmem:[#allocation4 + $0x48] sm:$0xff]
        %v1074 = vld [vmem:[#allocation4 + $0x50] sm:$0xff]
        %v1075 = vld [vmem:[#allocation4 + $0x58] sm:$0xff]
        %v1076 = vld [vmem:[#allocation4 + $0x60] sm:$0xff]
        %v1077 = vld [vmem:[#allocation4 + $0x68] sm:$0xff]
        %v1078 = vld [vmem:[#allocation4 + $0x70] sm:$0xff]
        %v1079 = vld [vmem:[#allocation4 + $0x78] sm:$0xff]
        %v1080 = vld [vmem:[#allocation4 + $0x80] sm:$0xff]
        %v1081 = vld [vmem:[#allocation4 + $0x88] sm:$0xff]
        %v1082 = vld [vmem:[#allocation4 + $0x90] sm:$0xff]
        %v1083 = vld [vmem:[#allocation4 + $0x98] sm:$0xff]
        %v1084 = vld [vmem:[#allocation4 + $0xa0] sm:$0xff]
        %v1085 = vld [vmem:[#allocation4 + $0xa8] sm:$0xff]
        %v1086 = vld [vmem:[#allocation4 + $0xb0] sm:$0xff]
        %v1087 = vld [vmem:[#allocation4 + $0xb8] sm:$0xff]
        %v1088 = vld [vmem:[%s3] sm:$0xff]
        %v1089 = vld [vmem:[%s3 + $0x8] sm:$0xff]
        %v1090 = vld [vmem:[%s3 + $0x10] sm:$0xff]
        %v1091 = vld [vmem:[%s3 + $0x18] sm:$0xff]
        %v1092 = vld [vmem:[%s3 + $0x20] sm:$0xff]
        %v1093 = vld [vmem:[%s3 + $0x28] sm:$0xff]
        %v1094 = vld [vmem:[%s3 + $0x30] sm:$0xff]
        %v1095 = vld [vmem:[%s3 + $0x38] sm:$0xff]
        %v1096 = vld [vmem:[%s3 + $0x40] sm:$0xff]
        %v1097 = vld [vmem:[%s3 + $0x48] sm:$0xff]
        %v1098 = vld [vmem:[%s3 + $0x50] sm:$0xff]
        %v1099 = vld [vmem:[%s3 + $0x58] sm:$0xff]
        %v1100 = vld [vmem:[%s3 + $0x60] sm:$0xff]
        %v1101 = vld [vmem:[%s3 + $0x68] sm:$0xff]
        %v1102 = vld [vmem:[%s3 + $0x70] sm:$0xff]
        %v1103 = vld [vmem:[%s3 + $0x78] sm:$0xff]
        %v1104 = vld [vmem:[%s3 + $0x80] sm:$0xff]
        %v1105 = vld [vmem:[%s3 + $0x88] sm:$0xff]
        %v1106 = vld [vmem:[%s3 + $0x90] sm:$0xff]
        %v1107 = vld [vmem:[%s3 + $0x98] sm:$0xff]
        %v1108 = vld [vmem:[%s3 + $0xa0] sm:$0xff]
        %v1109 = vld [vmem:[%s3 + $0xa8] sm:$0xff]
        %v1110 = vld [vmem:[%s3 + $0xb0] sm:$0xff]
        %v1111 = vld [vmem:[%s3 + $0xb8] sm:$0xff]
        %v1112 = vld [vmem:[%s3 + $0xc0] sm:$0xff]
        %v1113 = vld [vmem:[%s3 + $0xc8] sm:$0xff]
        %v1114 = vld [vmem:[%s3 + $0xd0] sm:$0xff]
        %v1115 = vld [vmem:[%s3 + $0xd8] sm:$0xff]
        %v1116 = vld [vmem:[%s3 + $0xe0] sm:$0xff]
        %v1117 = vld [vmem:[%s3 + $0xe8] sm:$0xff]
        %v1118 = vld [vmem:[%s3 + $0xf0] sm:$0xff]
        %v1119 = vld [vmem:[%s3 + $0xf8] sm:$0xff]
        %v1120 = vld [vmem:[%s3 + $0x100] sm:$0xff]
        %v1121 = vld [vmem:[%s3 + $0x108] sm:$0xff]
        %v1122 = vld [vmem:[%s3 + $0x110] sm:$0xff]
        %v1123 = vld [vmem:[%s3 + $0x118] sm:$0xff]
        %v1124 = vld [vmem:[%s4] sm:$0x1]
        %v1126 = vlaneseq
        %v1127 = vshrl.u32 %v1126, 7
        %v1128 = vsub.s32 0, %v1127
        %v1129 = vrot.slane %v1124, %v1128
        %v1132 = vsel %vm352, %v1066, 0
        %v1135 = vsel %vm352, %v1069, 0
        %v1138 = vsel %vm352, %v1072, 0
        %v1141 = vsel %vm352, %v1075, 0
        %v1144 = vsel %vm352, %v1078, 0
        %v1147 = vsel %vm352, %v1081, 0
        %v1150 = vsel %vm352, %v1084, 0
        %v1153 = vsel %vm352, %v1087, 0
        %1155 = vmatprep.subr.mxu0 0.0
        %1156 = vmatpush1.msra.mxu0 %v1088
        %1157 = vmatprep.subr.mxu0 0.0
        %1158 = vmatpush1.msra.mxu0 %v1089
        %1159 = vmatprep.subr.mxu0 0.0
        %1160 = vmatpush1.msra.mxu0 %v1090
        %1161 = vmatprep.subr.mxu0 0.0
        %1162 = vmatpush1.msra.mxu0 %v1091
        %1163 = vmatprep.subr.mxu0 0.0
        %1164 = vmatpush1.msra.mxu0 %v1092
        %1165 = vmatprep.subr.mxu0 0.0
        %1166 = vmatpush1.msra.mxu0 %v1093
        %1167 = vmatprep.subr.mxu0 0.0
        %1168 = vmatpush1.msra.mxu0 %v1094
        %1169 = vmatprep.subr.mxu0 0.0
        %1170 = vmatpush1.msra.mxu0 %v1095
        %1171 = vmatprep.subr.mxu0 0.0
        %1172 = vmatpush1.msra.mxu0 %v1096
        %1173 = vmatprep.subr.mxu0 0.0
        %1174 = vmatpush1.msra.mxu0 %v1097
        %1175 = vmatprep.subr.mxu0 0.0
        %1176 = vmatpush1.msra.mxu0 %v1098
        %1177 = vmatprep.subr.mxu0 0.0
        %1178 = vmatpush1.msra.mxu0 %v1099
        %1179 = vmatprep.subr.mxu0 0.0
        %1180 = vmatpush1.msra.mxu0 %v1100
        %1181 = vmatprep.subr.mxu0 0.0
        %1182 = vmatpush1.msra.mxu0 %v1101
        %1183 = vmatprep.subr.mxu0 0.0
        %1184 = vmatpush1.msra.mxu0 %v1102
        %1185 = vmatprep.subr.mxu0 0.0
        %1186 = vmatpush1.msra.mxu0 %v1103
        %1187 = vmatprep.subr.mxu0 0.0
        %1188 = vmatpush1.msra.mxu0 %v1104
        %1189 = vmatprep.subr.mxu0 0.0
        %1190 = vmatpush1.msra.mxu0 %v1105
        %1191 = vmatprep.subr.mxu0 0.0
        %1192 = vmatpush1.msra.mxu0 %v1106
        %1193 = vmatprep.subr.mxu0 0.0
        %1194 = vmatpush1.msra.mxu0 %v1107
        %1195 = vmatprep.subr.mxu0 0.0
        %1196 = vmatpush1.msra.mxu0 %v1108
        %1197 = vmatprep.subr.mxu0 0.0
        %1198 = vmatpush1.msra.mxu0 %v1109
        %1199 = vmatprep.subr.mxu0 0.0
        %1200 = vmatpush1.msra.mxu0 %v1110
        %1201 = vmatprep.subr.mxu0 0.0
        %1202 = vmatpush1.msra.mxu0 %v1111
        %1203 = vmatprep.subr.mxu0 0.0
        %1204 = vmatpush1.msra.mxu0 %v1112
        %1205 = vmatprep.subr.mxu0 0.0
        %1206 = vmatpush1.msra.mxu0 %v1113
        %1207 = vmatprep.subr.mxu0 0.0
        %1208 = vmatpush1.msra.mxu0 %v1114
        %1209 = vmatprep.subr.mxu0 0.0
        %1210 = vmatpush1.msra.mxu0 %v1115
        %1211 = vmatprep.subr.mxu0 0.0
        %1212 = vmatpush1.msra.mxu0 %v1116
        %1213 = vmatprep.subr.mxu0 0.0
        %1214 = vmatpush1.msra.mxu0 %v1117
        %1215 = vmatprep.subr.mxu0 0.0
        %1216 = vmatpush1.msra.mxu0 %v1118
        %1217 = vmatprep.subr.mxu0 0.0
        %1218 = vmatpush1.msra.mxu0 %v1119
        %1219 = vmatprep.mubr.f32.mxu0 %v1065
        %1220 = vmatmul.mubr.f32.gmra.mrb[0].mxu0 %v1064
        %v1221 = vpop.f32.mrb[0].mxu0
        %v1222 = vadd.f32 %v1129, %v1221
        %v1223 = vpop.f32.mrb[0].mxu0
        %1224 = vmatprep.mubr.f32.mxu0 %v1068
        %1225 = vmatmul.mubr.f32.gmra.mrb[0].mxu0 %v1067
        %v1226 = vpop.f32.mrb[0].mxu0
        %v1227 = vadd.f32 %v1129, %v1226
        %v1228 = vpop.f32.mrb[0].mxu0
        %1229 = vmatprep.mubr.f32.mxu0 %v1071
        %1230 = vmatmul.mubr.f32.gmra.mrb[0].mxu0 %v1070
        %v1231 = vpop.f32.mrb[0].mxu0
        %v1232 = vadd.f32 %v1129, %v1231
        %v1233 = vpop.f32.mrb[0].mxu0
        %1234 = vmatprep.mubr.f32.mxu0 %v1074
        %1235 = vmatmul.mubr.f32.gmra.mrb[0].mxu0 %v1073
        %v1236 = vpop.f32.mrb[0].mxu0
        %v1237 = vadd.f32 %v1129, %v1236
        %v1238 = vpop.f32.mrb[0].mxu0
        %1239 = vmatprep.mubr.f32.mxu0 %v1077
        %1240 = vmatmul.mubr.f32.gmra.mrb[0].mxu0 %v1076
        %v1241 = vpop.f32.mrb[0].mxu0
        %v1242 = vadd.f32 %v1129, %v1241
        %v1243 = vpop.f32.mrb[0].mxu0
        %1244 = vmatprep.mubr.f32.mxu0 %v1080
        %1245 = vmatmul.mubr.f32.gmra.mrb[0].mxu0 %v1079
        %v1246 = vpop.f32.mrb[0].mxu0
        %v1247 = vadd.f32 %v1129, %v1246
        %v1248 = vpop.f32.mrb[0].mxu0
        %1249 = vmatprep.mubr.f32.mxu0 %v1083
        %1250 = vmatmul.mubr.f32.gmra.mrb[0].mxu0 %v1082
        %v1251 = vpop.f32.mrb[0].mxu0
        %v1252 = vadd.f32 %v1129, %v1251
        %v1253 = vpop.f32.mrb[0].mxu0
        %1254 = vmatprep.mubr.f32.mxu0 %v1086
        %1255 = vmatmul.mubr.f32.gmra.mrb[0].mxu0 %v1085
        %v1256 = vpop.f32.mrb[0].mxu0
        %v1257 = vadd.f32 %v1129, %v1256
        %v1258 = vpop.f32.mrb[0].mxu0
        %1259 = vdwg.mxu0
        %1260 = vmatprep.subr.mxu0 0.0
        %1261 = vmatpush1.msra.mxu0 %v1120
        %1262 = vmatprep.subr.mxu0 0.0
        %1263 = vmatpush1.msra.mxu0 %v1121
        %1264 = vmatprep.subr.mxu0 0.0
        %1265 = vmatpush1.msra.mxu0 %v1122
        %1266 = vmatprep.subr.mxu0 0.0
        %1267 = vmatpush1.msra.mxu0 %v1123
        %1268 = vmatprep.subr.mxu0 0.0
        %1269 = vmatpush1.msra.mxu0 0.0
        %1270 = vmatprep.subr.mxu0 0.0
        %1271 = vmatpush1.msra.mxu0 0.0
        %1272 = vmatprep.subr.mxu0 0.0
        %1273 = vmatpush1.msra.mxu0 0.0
        %1274 = vmatprep.subr.mxu0 0.0
        %1275 = vmatpush1.msra.mxu0 0.0
        %1276 = vmatprep.subr.mxu0 0.0
        %1277 = vmatpush1.msra.mxu0 0.0
        %1278 = vmatprep.subr.mxu0 0.0
        %1279 = vmatpush1.msra.mxu0 0.0
        %1280 = vmatprep.subr.mxu0 0.0
        %1281 = vmatpush1.msra.mxu0 0.0
        %1282 = vmatprep.subr.mxu0 0.0
        %1283 = vmatpush1.msra.mxu0 0.0
        %1284 = vmatprep.subr.mxu0 0.0
        %1285 = vmatpush1.msra.mxu0 0.0
        %1286 = vmatprep.subr.mxu0 0.0
        %1287 = vmatpush1.msra.mxu0 0.0
        %1288 = vmatprep.subr.mxu0 0.0
        %1289 = vmatpush1.msra.mxu0 0.0
        %1290 = vmatprep.subr.mxu0 0.0
        %1291 = vmatpush1.msra.mxu0 0.0
        %1292 = vmatprep.subr.mxu0 0.0
        %1293 = vmatpush1.msra.mxu0 0.0
        %1294 = vmatprep.subr.mxu0 0.0
        %1295 = vmatpush1.msra.mxu0 0.0
        %1296 = vmatprep.subr.mxu0 0.0
        %1297 = vmatpush1.msra.mxu0 0.0
        %1298 = vmatprep.subr.mxu0 0.0
        %1299 = vmatpush1.msra.mxu0 0.0
        %1300 = vmatprep.subr.mxu0 0.0
        %1301 = vmatpush1.msra.mxu0 0.0
        %1302 = vmatprep.subr.mxu0 0.0
        %1303 = vmatpush1.msra.mxu0 0.0
        %1304 = vmatprep.subr.mxu0 0.0
        %1305 = vmatpush1.msra.mxu0 0.0
        %1306 = vmatprep.subr.mxu0 0.0
        %1307 = vmatpush1.msra.mxu0 0.0
        %1308 = vmatprep.subr.mxu0 0.0
        %1309 = vmatpush1.msra.mxu0 0.0
        %1310 = vmatprep.subr.mxu0 0.0
        %1311 = vmatpush1.msra.mxu0 0.0
        %1312 = vmatprep.subr.mxu0 0.0
        %1313 = vmatpush1.msra.mxu0 0.0
        %1314 = vmatprep.subr.mxu0 0.0
        %1315 = vmatpush1.msra.mxu0 0.0
        %1316 = vmatprep.subr.mxu0 0.0
        %1317 = vmatpush1.msra.mxu0 0.0
        %1318 = vmatprep.subr.mxu0 0.0
        %1319 = vmatpush1.msra.mxu0 0.0
        %1320 = vmatprep.subr.mxu0 0.0
        %1321 = vmatpush1.msra.mxu0 0.0
        %1322 = vmatprep.subr.mxu0 0.0
        %1323 = vmatpush1.msra.mxu0 0.0
        %1324 = vmatprep.mubr.f32.mxu0 0.0
        %1325 = vmatmul.mubr.f32.gmra.mrb[0].mxu0 %v1132
        %v1326 = vpop.f32.mrb[0].mxu0
        %v1327 = vadd.f32 %v1222, %v1326
        %v1328 = vpop.f32.mrb[0].mxu0
        %1329 = vmatprep.mubr.f32.mxu0 0.0
        %1330 = vmatmul.mubr.f32.gmra.mrb[0].mxu0 %v1135
        %v1331 = vpop.f32.mrb[0].mxu0
        %v1332 = vadd.f32 %v1227, %v1331
        %v1333 = vpop.f32.mrb[0].mxu0
        %1334 = vmatprep.mubr.f32.mxu0 0.0
        %1335 = vmatmul.mubr.f32.gmra.mrb[0].mxu0 %v1138
        %v1336 = vpop.f32.mrb[0].mxu0
        %v1337 = vadd.f32 %v1232, %v1336
        %v1338 = vpop.f32.mrb[0].mxu0
        %1339 = vmatprep.mubr.f32.mxu0 0.0
        %1340 = vmatmul.mubr.f32.gmra.mrb[0].mxu0 %v1141
        %v1341 = vpop.f32.mrb[0].mxu0
        %v1342 = vadd.f32 %v1237, %v1341
        %v1343 = vpop.f32.mrb[0].mxu0
        %1344 = vmatprep.mubr.f32.mxu0 0.0
        %1345 = vmatmul.mubr.f32.gmra.mrb[0].mxu0 %v1144
        %v1346 = vpop.f32.mrb[0].mxu0
        %v1347 = vadd.f32 %v1242, %v1346
        %v1348 = vpop.f32.mrb[0].mxu0
        %1349 = vmatprep.mubr.f32.mxu0 0.0
        %1350 = vmatmul.mubr.f32.gmra.mrb[0].mxu0 %v1147
        %v1351 = vpop.f32.mrb[0].mxu0
        %v1352 = vadd.f32 %v1247, %v1351
        %v1353 = vpop.f32.mrb[0].mxu0
        %1354 = vmatprep.mubr.f32.mxu0 0.0
        %1355 = vmatmul.mubr.f32.gmra.mrb[0].mxu0 %v1150
        %v1356 = vpop.f32.mrb[0].mxu0
        %v1357 = vadd.f32 %v1252, %v1356
        %v1358 = vpop.f32.mrb[0].mxu0
        %1359 = vmatprep.mubr.f32.mxu0 0.0
        %1360 = vmatmul.mubr.f32.gmra.mrb[0].mxu0 %v1153
        %v1361 = vpop.f32.mrb[0].mxu0
        %v1362 = vadd.f32 %v1257, %v1361
        %v1363 = vpop.f32.mrb[0].mxu0
        %1364 = vdwg.mxu0
        %v1365 = vmax.f32 %v1327, 0.0
        %v1366 = vmax.f32 %v1332, 0.0
        %v1367 = vmax.f32 %v1337, 0.0
        %v1368 = vmax.f32 %v1342, 0.0
        %v1369 = vmax.f32 %v1347, 0.0
        %v1370 = vmax.f32 %v1352, 0.0
        %v1371 = vmax.f32 %v1357, 0.0
        %v1372 = vmax.f32 %v1362, 0.0
        %1373 = vst.msk [vmem:[%s715 + $0x1] sm:$0xff] %vm352, %v1365
        %1374 = vst.msk [vmem:[%s715 + $0x11] sm:$0xff] %vm352, %v1366
        %1375 = vst.msk [vmem:[%s715 + $0x21] sm:$0xff] %vm352, %v1367
        %1376 = vst.msk [vmem:[%s715 + $0x31] sm:$0xff] %vm352, %v1368
        %1377 = vst.msk [vmem:[%s715 + $0x41] sm:$0xff] %vm352, %v1369
        %1378 = vst.msk [vmem:[%s715 + $0x51] sm:$0xff] %vm352, %v1370
        %1379 = vst.msk [vmem:[%s715 + $0x61] sm:$0xff] %vm352, %v1371
        %1380 = vst.msk [vmem:[%s715 + $0x71] sm:$0xff] %vm352, %v1372
        %v1381 = vld [vmem:[#allocation3] sm:$0xff]
        %v1382 = vld [vmem:[#allocation3 + $0x10] sm:$0xff]
        %v1383 = vld [vmem:[#allocation3 + $0x20] sm:$0xff]
        %v1384 = vld [vmem:[#allocation3 + $0x30] sm:$0xff]
        %v1385 = vld [vmem:[#allocation3 + $0x40] sm:$0xff]
        %v1386 = vld [vmem:[#allocation3 + $0x50] sm:$0xff]
        %v1387 = vld [vmem:[#allocation3 + $0x60] sm:$0xff]
        %v1388 = vld [vmem:[#allocation3 + $0x70] sm:$0xff]
        %1389 = vst.msk [vmem:[#allocation4] sm:$0xff] %vm352, %v1381
        %1390 = vst.msk [vmem:[#allocation4 + $0x18] sm:$0xff] %vm352, %v1382
        %1391 = vst.msk [vmem:[#allocation4 + $0x30] sm:$0xff] %vm352, %v1383
        %1392 = vst.msk [vmem:[#allocation4 + $0x48] sm:$0xff] %vm352, %v1384
        %1393 = vst.msk [vmem:[#allocation4 + $0x60] sm:$0xff] %vm352, %v1385
        %1394 = vst.msk [vmem:[#allocation4 + $0x78] sm:$0xff] %vm352, %v1386
        %1395 = vst.msk [vmem:[#allocation4 + $0x90] sm:$0xff] %vm352, %v1387
        %1396 = vst.msk [vmem:[#allocation4 + $0xa8] sm:$0xff] %vm352, %v1388
        %v1397 = vld [vmem:[#allocation3 + $0x1] sm:$0xff]
        %v1398 = vld [vmem:[#allocation3 + $0x11] sm:$0xff]
        %v1399 = vld [vmem:[#allocation3 + $0x21] sm:$0xff]
        %v1400 = vld [vmem:[#allocation3 + $0x31] sm:$0xff]
        %v1401 = vld [vmem:[#allocation3 + $0x41] sm:$0xff]
        %v1402 = vld [vmem:[#allocation3 + $0x51] sm:$0xff]
        %v1403 = vld [vmem:[#allocation3 + $0x61] sm:$0xff]
        %v1404 = vld [vmem:[#allocation3 + $0x71] sm:$0xff]
        %1413 = vrot.lane.b32.xlu0 %v1397, 32
        %v1414 = vpop.permute.xlu0 %1413
        %1415 = vrot.lane.b32.xlu0 %v1398, 32
        %v1416 = vpop.permute.xlu0 %1415
        %1417 = vrot.lane.b32.xlu0 %v1399, 32
        %v1418 = vpop.permute.xlu0 %1417
        %1419 = vrot.lane.b32.xlu0 %v1400, 32
        %v1420 = vpop.permute.xlu0 %1419
        %1421 = vrot.lane.b32.xlu0 %v1401, 32
        %v1422 = vpop.permute.xlu0 %1421
        %1423 = vrot.lane.b32.xlu0 %v1402, 32
        %v1424 = vpop.permute.xlu0 %1423
        %1425 = vrot.lane.b32.xlu0 %v1403, 32
        %v1426 = vpop.permute.xlu0 %1425
        %1427 = vrot.lane.b32.xlu0 %v1404, 32
        %v1428 = vpop.permute.xlu0 %1427
        %1437 = vst.msk [vmem:[#allocation4] sm:$0xff] %vm780, %v1414
        %1438 = vst.msk [vmem:[#allocation4 + $0x18] sm:$0xff] %vm780, %v1416
        %1439 = vst.msk [vmem:[#allocation4 + $0x30] sm:$0xff] %vm780, %v1418
        %1440 = vst.msk [vmem:[#allocation4 + $0x48] sm:$0xff] %vm780, %v1420
        %1441 = vst.msk [vmem:[#allocation4 + $0x60] sm:$0xff] %vm780, %v1422
        %1442 = vst.msk [vmem:[#allocation4 + $0x78] sm:$0xff] %vm780, %v1424
        %1443 = vst.msk [vmem:[#allocation4 + $0x90] sm:$0xff] %vm780, %v1426
        %1444 = vst.msk [vmem:[#allocation4 + $0xa8] sm:$0xff] %vm780, %v1428
        %v1445 = vld [vmem:[#allocation3 + $0x2] sm:$0xff]
        %v1446 = vld [vmem:[#allocation3 + $0x12] sm:$0xff]
        %v1447 = vld [vmem:[#allocation3 + $0x22] sm:$0xff]
        %v1448 = vld [vmem:[#allocation3 + $0x32] sm:$0xff]
        %v1449 = vld [vmem:[#allocation3 + $0x42] sm:$0xff]
        %v1450 = vld [vmem:[#allocation3 + $0x52] sm:$0xff]
        %v1451 = vld [vmem:[#allocation3 + $0x62] sm:$0xff]
        %v1452 = vld [vmem:[#allocation3 + $0x72] sm:$0xff]
        %1461 = vrot.lane.b32.xlu0 %v1445, 64
        %v1462 = vpop.permute.xlu0 %1461
        %1463 = vrot.lane.b32.xlu0 %v1446, 64
        %v1464 = vpop.permute.xlu0 %1463
        %1465 = vrot.lane.b32.xlu0 %v1447, 64
        %v1466 = vpop.permute.xlu0 %1465
        %1467 = vrot.lane.b32.xlu0 %v1448, 64
        %v1468 = vpop.permute.xlu0 %1467
        %1469 = vrot.lane.b32.xlu0 %v1449, 64
        %v1470 = vpop.permute.xlu0 %1469
        %1471 = vrot.lane.b32.xlu0 %v1450, 64
        %v1472 = vpop.permute.xlu0 %1471
        %1473 = vrot.lane.b32.xlu0 %v1451, 64
        %v1474 = vpop.permute.xlu0 %1473
        %1475 = vrot.lane.b32.xlu0 %v1452, 64
        %v1476 = vpop.permute.xlu0 %1475
        %1485 = vst.msk [vmem:[#allocation4] sm:$0xff] %vm829, %v1462
        %1486 = vst.msk [vmem:[#allocation4 + $0x18] sm:$0xff] %vm829, %v1464
        %1487 = vst.msk [vmem:[#allocation4 + $0x30] sm:$0xff] %vm829, %v1466
        %1488 = vst.msk [vmem:[#allocation4 + $0x48] sm:$0xff] %vm829, %v1468
        %1489 = vst.msk [vmem:[#allocation4 + $0x60] sm:$0xff] %vm829, %v1470
        %1490 = vst.msk [vmem:[#allocation4 + $0x78] sm:$0xff] %vm829, %v1472
        %1491 = vst.msk [vmem:[#allocation4 + $0x90] sm:$0xff] %vm829, %v1474
        %1492 = vst.msk [vmem:[#allocation4 + $0xa8] sm:$0xff] %vm829, %v1476
        %v1493 = vld [vmem:[%s715] sm:$0xff]
        %v1494 = vld [vmem:[%s715 + $0x10] sm:$0xff]
        %v1495 = vld [vmem:[%s715 + $0x20] sm:$0xff]
        %v1496 = vld [vmem:[%s715 + $0x30] sm:$0xff]
        %v1497 = vld [vmem:[%s715 + $0x40] sm:$0xff]
        %v1498 = vld [vmem:[%s715 + $0x50] sm:$0xff]
        %v1499 = vld [vmem:[%s715 + $0x60] sm:$0xff]
        %v1500 = vld [vmem:[%s715 + $0x70] sm:$0xff]
        %1509 = vrot.lane.b32.xlu0 %v1493, 96
        %v1510 = vpop.permute.xlu0 %1509
        %1511 = vrot.lane.b32.xlu0 %v1494, 96
        %v1512 = vpop.permute.xlu0 %1511
        %1513 = vrot.lane.b32.xlu0 %v1495, 96
        %v1514 = vpop.permute.xlu0 %1513
        %1515 = vrot.lane.b32.xlu0 %v1496, 96
        %v1516 = vpop.permute.xlu0 %1515
        %1517 = vrot.lane.b32.xlu0 %v1497, 96
        %v1518 = vpop.permute.xlu0 %1517
        %1519 = vrot.lane.b32.xlu0 %v1498, 96
        %v1520 = vpop.permute.xlu0 %1519
        %1521 = vrot.lane.b32.xlu0 %v1499, 96
        %v1522 = vpop.permute.xlu0 %1521
        %1523 = vrot.lane.b32.xlu0 %v1500, 96
        %v1524 = vpop.permute.xlu0 %1523
        %1533 = vst.msk [vmem:[#allocation4] sm:$0xff] %vm878, %v1510
        %1534 = vst.msk [vmem:[#allocation4 + $0x18] sm:$0xff] %vm878, %v1512
        %1535 = vst.msk [vmem:[#allocation4 + $0x30] sm:$0xff] %vm878, %v1514
        %1536 = vst.msk [vmem:[#allocation4 + $0x48] sm:$0xff] %vm878, %v1516
        %1537 = vst.msk [vmem:[#allocation4 + $0x60] sm:$0xff] %vm878, %v1518
        %1538 = vst.msk [vmem:[#allocation4 + $0x78] sm:$0xff] %vm878, %v1520
        %1539 = vst.msk [vmem:[#allocation4 + $0x90] sm:$0xff] %vm878, %v1522
        %1540 = vst.msk [vmem:[#allocation4 + $0xa8] sm:$0xff] %vm878, %v1524
        %v1541 = vld [vmem:[%s715 + $0x1] sm:$0xff]
        %v1542 = vld [vmem:[%s715 + $0x11] sm:$0xff]
        %v1543 = vld [vmem:[%s715 + $0x21] sm:$0xff]
        %v1544 = vld [vmem:[%s715 + $0x31] sm:$0xff]
        %v1545 = vld [vmem:[%s715 + $0x41] sm:$0xff]
        %v1546 = vld [vmem:[%s715 + $0x51] sm:$0xff]
        %v1547 = vld [vmem:[%s715 + $0x61] sm:$0xff]
        %v1548 = vld [vmem:[%s715 + $0x71] sm:$0xff]
        %1549 = vst.msk [vmem:[#allocation4 + $0x8] sm:$0xff] %vm352, %v1541
        %1550 = vst.msk [vmem:[#allocation4 + $0x20] sm:$0xff] %vm352, %v1542
        %1551 = vst.msk [vmem:[#allocation4 + $0x38] sm:$0xff] %vm352, %v1543
        %1552 = vst.msk [vmem:[#allocation4 + $0x50] sm:$0xff] %vm352, %v1544
        %1553 = vst.msk [vmem:[#allocation4 + $0x68] sm:$0xff] %vm352, %v1545
        %1554 = vst.msk [vmem:[#allocation4 + $0x80] sm:$0xff] %vm352, %v1546
        %1555 = vst.msk [vmem:[#allocation4 + $0x98] sm:$0xff] %vm352, %v1547
        %1556 = vst.msk [vmem:[#allocation4 + $0xb0] sm:$0xff] %vm352, %v1548
        %v1557 = vld [vmem:[%s715 + $0x2] sm:$0xff]
        %v1558 = vld [vmem:[%s715 + $0x12] sm:$0xff]
        %v1559 = vld [vmem:[%s715 + $0x22] sm:$0xff]
        %v1560 = vld [vmem:[%s715 + $0x32] sm:$0xff]
        %v1561 = vld [vmem:[%s715 + $0x42] sm:$0xff]
        %v1562 = vld [vmem:[%s715 + $0x52] sm:$0xff]
        %v1563 = vld [vmem:[%s715 + $0x62] sm:$0xff]
        %v1564 = vld [vmem:[%s715 + $0x72] sm:$0xff]
        %1573 = vrot.lane.b32.xlu0 %v1557, 32
        %v1574 = vpop.permute.xlu0 %1573
        %1575 = vrot.lane.b32.xlu0 %v1558, 32
        %v1576 = vpop.permute.xlu0 %1575
        %1577 = vrot.lane.b32.xlu0 %v1559, 32
        %v1578 = vpop.permute.xlu0 %1577
        %1579 = vrot.lane.b32.xlu0 %v1560, 32
        %v1580 = vpop.permute.xlu0 %1579
        %1581 = vrot.lane.b32.xlu0 %v1561, 32
        %v1582 = vpop.permute.xlu0 %1581
        %1583 = vrot.lane.b32.xlu0 %v1562, 32
        %v1584 = vpop.permute.xlu0 %1583
        %1585 = vrot.lane.b32.xlu0 %v1563, 32
        %v1586 = vpop.permute.xlu0 %1585
        %1587 = vrot.lane.b32.xlu0 %v1564, 32
        %v1588 = vpop.permute.xlu0 %1587
        %1597 = vst.msk [vmem:[#allocation4 + $0x8] sm:$0xff] %vm780, %v1574
        %1598 = vst.msk [vmem:[#allocation4 + $0x20] sm:$0xff] %vm780, %v1576
        %1599 = vst.msk [vmem:[#allocation4 + $0x38] sm:$0xff] %vm780, %v1578
        %1600 = vst.msk [vmem:[#allocation4 + $0x50] sm:$0xff] %vm780, %v1580
        %1601 = vst.msk [vmem:[#allocation4 + $0x68] sm:$0xff] %vm780, %v1582
        %1602 = vst.msk [vmem:[#allocation4 + $0x80] sm:$0xff] %vm780, %v1584
        %1603 = vst.msk [vmem:[#allocation4 + $0x98] sm:$0xff] %vm780, %v1586
        %1604 = vst.msk [vmem:[#allocation4 + $0xb0] sm:$0xff] %vm780, %v1588
        %v1605 = vld [vmem:[%s951] sm:$0xff]
        %v1606 = vld [vmem:[%s951 + $0x10] sm:$0xff]
        %v1607 = vld [vmem:[%s951 + $0x20] sm:$0xff]
        %v1608 = vld [vmem:[%s951 + $0x30] sm:$0xff]
        %v1609 = vld [vmem:[%s951 + $0x40] sm:$0xff]
        %v1610 = vld [vmem:[%s951 + $0x50] sm:$0xff]
        %v1611 = vld [vmem:[%s951 + $0x60] sm:$0xff]
        %v1612 = vld [vmem:[%s951 + $0x70] sm:$0xff]
        %1621 = vrot.lane.b32.xlu0 %v1605, 64
        %v1622 = vpop.permute.xlu0 %1621
        %1623 = vrot.lane.b32.xlu0 %v1606, 64
        %v1624 = vpop.permute.xlu0 %1623
        %1625 = vrot.lane.b32.xlu0 %v1607, 64
        %v1626 = vpop.permute.xlu0 %1625
        %1627 = vrot.lane.b32.xlu0 %v1608, 64
        %v1628 = vpop.permute.xlu0 %1627
        %1629 = vrot.lane.b32.xlu0 %v1609, 64
        %v1630 = vpop.permute.xlu0 %1629
        %1631 = vrot.lane.b32.xlu0 %v1610, 64
        %v1632 = vpop.permute.xlu0 %1631
        %1633 = vrot.lane.b32.xlu0 %v1611, 64
        %v1634 = vpop.permute.xlu0 %1633
        %1635 = vrot.lane.b32.xlu0 %v1612, 64
        %v1636 = vpop.permute.xlu0 %1635
        %1645 = vst.msk [vmem:[#allocation4 + $0x8] sm:$0xff] %vm829, %v1622
        %1646 = vst.msk [vmem:[#allocation4 + $0x20] sm:$0xff] %vm829, %v1624
        %1647 = vst.msk [vmem:[#allocation4 + $0x38] sm:$0xff] %vm829, %v1626
        %1648 = vst.msk [vmem:[#allocation4 + $0x50] sm:$0xff] %vm829, %v1628
        %1649 = vst.msk [vmem:[#allocation4 + $0x68] sm:$0xff] %vm829, %v1630
        %1650 = vst.msk [vmem:[#allocation4 + $0x80] sm:$0xff] %vm829, %v1632
        %1651 = vst.msk [vmem:[#allocation4 + $0x98] sm:$0xff] %vm829, %v1634
        %1652 = vst.msk [vmem:[#allocation4 + $0xb0] sm:$0xff] %vm829, %v1636
        %v1653 = vld [vmem:[%s951 + $0x1] sm:$0xff]
        %v1654 = vld [vmem:[%s951 + $0x11] sm:$0xff]
        %v1655 = vld [vmem:[%s951 + $0x21] sm:$0xff]
        %v1656 = vld [vmem:[%s951 + $0x31] sm:$0xff]
        %v1657 = vld [vmem:[%s951 + $0x41] sm:$0xff]
        %v1658 = vld [vmem:[%s951 + $0x51] sm:$0xff]
        %v1659 = vld [vmem:[%s951 + $0x61] sm:$0xff]
        %v1660 = vld [vmem:[%s951 + $0x71] sm:$0xff]
        %1669 = vrot.lane.b32.xlu0 %v1653, 96
        %v1670 = vpop.permute.xlu0 %1669
        %1671 = vrot.lane.b32.xlu0 %v1654, 96
        %v1672 = vpop.permute.xlu0 %1671
        %1673 = vrot.lane.b32.xlu0 %v1655, 96
        %v1674 = vpop.permute.xlu0 %1673
        %1675 = vrot.lane.b32.xlu0 %v1656, 96
        %v1676 = vpop.permute.xlu0 %1675
        %1677 = vrot.lane.b32.xlu0 %v1657, 96
        %v1678 = vpop.permute.xlu0 %1677
        %1679 = vrot.lane.b32.xlu0 %v1658, 96
        %v1680 = vpop.permute.xlu0 %1679
        %1681 = vrot.lane.b32.xlu0 %v1659, 96
        %v1682 = vpop.permute.xlu0 %1681
        %1683 = vrot.lane.b32.xlu0 %v1660, 96
        %v1684 = vpop.permute.xlu0 %1683
        %1693 = vst.msk [vmem:[#allocation4 + $0x8] sm:$0xff] %vm878, %v1670
        %1694 = vst.msk [vmem:[#allocation4 + $0x20] sm:$0xff] %vm878, %v1672
        %1695 = vst.msk [vmem:[#allocation4 + $0x38] sm:$0xff] %vm878, %v1674
        %1696 = vst.msk [vmem:[#allocation4 + $0x50] sm:$0xff] %vm878, %v1676
        %1697 = vst.msk [vmem:[#allocation4 + $0x68] sm:$0xff] %vm878, %v1678
        %1698 = vst.msk [vmem:[#allocation4 + $0x80] sm:$0xff] %vm878, %v1680
        %1699 = vst.msk [vmem:[#allocation4 + $0x98] sm:$0xff] %vm878, %v1682
        %1700 = vst.msk [vmem:[#allocation4 + $0xb0] sm:$0xff] %vm878, %v1684
        %v1701 = vld [vmem:[%s951 + $0x2] sm:$0xff]
        %v1702 = vld [vmem:[%s951 + $0x12] sm:$0xff]
        %v1703 = vld [vmem:[%s951 + $0x22] sm:$0xff]
        %v1704 = vld [vmem:[%s951 + $0x32] sm:$0xff]
        %v1705 = vld [vmem:[%s951 + $0x42] sm:$0xff]
        %v1706 = vld [vmem:[%s951 + $0x52] sm:$0xff]
        %v1707 = vld [vmem:[%s951 + $0x62] sm:$0xff]
        %v1708 = vld [vmem:[%s951 + $0x72] sm:$0xff]
        %1709 = vst.msk [vmem:[#allocation4 + $0x10] sm:$0xff] %vm352, %v1701
        %1710 = vst.msk [vmem:[#allocation4 + $0x28] sm:$0xff] %vm352, %v1702
        %1711 = vst.msk [vmem:[#allocation4 + $0x40] sm:$0xff] %vm352, %v1703
        %1712 = vst.msk [vmem:[#allocation4 + $0x58] sm:$0xff] %vm352, %v1704
        %1713 = vst.msk [vmem:[#allocation4 + $0x70] sm:$0xff] %vm352, %v1705
        %1714 = vst.msk [vmem:[#allocation4 + $0x88] sm:$0xff] %vm352, %v1706
        %1715 = vst.msk [vmem:[#allocation4 + $0xa0] sm:$0xff] %vm352, %v1707
        %1716 = vst.msk [vmem:[#allocation4 + $0xb8] sm:$0xff] %vm352, %v1708
        %v1717 = vld [vmem:[#allocation4] sm:$0xff]
        %v1718 = vld [vmem:[#allocation4 + $0x8] sm:$0xff]
        %v1719 = vld [vmem:[#allocation4 + $0x10] sm:$0xff]
        %v1720 = vld [vmem:[#allocation4 + $0x18] sm:$0xff]
        %v1721 = vld [vmem:[#allocation4 + $0x20] sm:$0xff]
        %v1722 = vld [vmem:[#allocation4 + $0x28] sm:$0xff]
        %v1723 = vld [vmem:[#allocation4 + $0x30] sm:$0xff]
        %v1724 = vld [vmem:[#allocation4 + $0x38] sm:$0xff]
        %v1725 = vld [vmem:[#allocation4 + $0x40] sm:$0xff]
        %v1726 = vld [vmem:[#allocation4 + $0x48] sm:$0xff]
        %v1727 = vld [vmem:[#allocation4 + $0x50] sm:$0xff]
        %v1728 = vld [vmem:[#allocation4 + $0x58] sm:$0xff]
        %v1729 = vld [vmem:[#allocation4 + $0x60] sm:$0xff]
        %v1730 = vld [vmem:[#allocation4 + $0x68] sm:$0xff]
        %v1731 = vld [vmem:[#allocation4 + $0x70] sm:$0xff]
        %v1732 = vld [vmem:[#allocation4 + $0x78] sm:$0xff]
        %v1733 = vld [vmem:[#allocation4 + $0x80] sm:$0xff]
        %v1734 = vld [vmem:[#allocation4 + $0x88] sm:$0xff]
        %v1735 = vld [vmem:[#allocation4 + $0x90] sm:$0xff]
        %v1736 = vld [vmem:[#allocation4 + $0x98] sm:$0xff]
        %v1737 = vld [vmem:[#allocation4 + $0xa0] sm:$0xff]
        %v1738 = vld [vmem:[#allocation4 + $0xa8] sm:$0xff]
        %v1739 = vld [vmem:[#allocation4 + $0xb0] sm:$0xff]
        %v1740 = vld [vmem:[#allocation4 + $0xb8] sm:$0xff]
        %v1741 = vld [vmem:[%s5] sm:$0xff]
        %v1742 = vld [vmem:[%s5 + $0x8] sm:$0xff]
        %v1743 = vld [vmem:[%s5 + $0x10] sm:$0xff]
        %v1744 = vld [vmem:[%s5 + $0x18] sm:$0xff]
        %v1745 = vld [vmem:[%s5 + $0x20] sm:$0xff]
        %v1746 = vld [vmem:[%s5 + $0x28] sm:$0xff]
        %v1747 = vld [vmem:[%s5 + $0x30] sm:$0xff]
        %v1748 = vld [vmem:[%s5 + $0x38] sm:$0xff]
        %v1749 = vld [vmem:[%s5 + $0x40] sm:$0xff]
        %v1750 = vld [vmem:[%s5 + $0x48] sm:$0xff]
        %v1751 = vld [vmem:[%s5 + $0x50] sm:$0xff]
        %v1752 = vld [vmem:[%s5 + $0x58] sm:$0xff]
        %v1753 = vld [vmem:[%s5 + $0x60] sm:$0xff]
        %v1754 = vld [vmem:[%s5 + $0x68] sm:$0xff]
        %v1755 = vld [vmem:[%s5 + $0x70] sm:$0xff]
        %v1756 = vld [vmem:[%s5 + $0x78] sm:$0xff]
        %v1757 = vld [vmem:[%s5 + $0x80] sm:$0xff]
        %v1758 = vld [vmem:[%s5 + $0x88] sm:$0xff]
        %v1759 = vld [vmem:[%s5 + $0x90] sm:$0xff]
        %v1760 = vld [vmem:[%s5 + $0x98] sm:$0xff]
        %v1761 = vld [vmem:[%s5 + $0xa0] sm:$0xff]
        %v1762 = vld [vmem:[%s5 + $0xa8] sm:$0xff]
        %v1763 = vld [vmem:[%s5 + $0xb0] sm:$0xff]
        %v1764 = vld [vmem:[%s5 + $0xb8] sm:$0xff]
        %v1765 = vld [vmem:[%s5 + $0xc0] sm:$0xff]
        %v1766 = vld [vmem:[%s5 + $0xc8] sm:$0xff]
        %v1767 = vld [vmem:[%s5 + $0xd0] sm:$0xff]
        %v1768 = vld [vmem:[%s5 + $0xd8] sm:$0xff]
        %v1769 = vld [vmem:[%s5 + $0xe0] sm:$0xff]
        %v1770 = vld [vmem:[%s5 + $0xe8] sm:$0xff]
        %v1771 = vld [vmem:[%s5 + $0xf0] sm:$0xff]
        %v1772 = vld [vmem:[%s5 + $0xf8] sm:$0xff]
        %v1773 = vld [vmem:[%s5 + $0x100] sm:$0xff]
        %v1774 = vld [vmem:[%s5 + $0x108] sm:$0xff]
        %v1775 = vld [vmem:[%s5 + $0x110] sm:$0xff]
        %v1776 = vld [vmem:[%s5 + $0x118] sm:$0xff]
        %v1777 = vld [vmem:[%s6] sm:$0x1]
        %v1779 = vlaneseq
        %v1780 = vshrl.u32 %v1779, 7
        %v1781 = vsub.s32 0, %v1780
        %v1782 = vrot.slane %v1777, %v1781
        %v1785 = vsel %vm352, %v1719, 0
        %v1788 = vsel %vm352, %v1722, 0
        %v1791 = vsel %vm352, %v1725, 0
        %v1794 = vsel %vm352, %v1728, 0
        %v1797 = vsel %vm352, %v1731, 0
        %v1800 = vsel %vm352, %v1734, 0
        %v1803 = vsel %vm352, %v1737, 0
        %v1806 = vsel %vm352, %v1740, 0
        %1808 = vmatprep.subr.mxu0 0.0
        %1809 = vmatpush1.msra.mxu0 %v1741
        %1810 = vmatprep.subr.mxu0 0.0
        %1811 = vmatpush1.msra.mxu0 %v1742
        %1812 = vmatprep.subr.mxu0 0.0
        %1813 = vmatpush1.msra.mxu0 %v1743
        %1814 = vmatprep.subr.mxu0 0.0
        %1815 = vmatpush1.msra.mxu0 %v1744
        %1816 = vmatprep.subr.mxu0 0.0
        %1817 = vmatpush1.msra.mxu0 %v1745
        %1818 = vmatprep.subr.mxu0 0.0
        %1819 = vmatpush1.msra.mxu0 %v1746
        %1820 = vmatprep.subr.mxu0 0.0
        %1821 = vmatpush1.msra.mxu0 %v1747
        %1822 = vmatprep.subr.mxu0 0.0
        %1823 = vmatpush1.msra.mxu0 %v1748
        %1824 = vmatprep.subr.mxu0 0.0
        %1825 = vmatpush1.msra.mxu0 %v1749
        %1826 = vmatprep.subr.mxu0 0.0
        %1827 = vmatpush1.msra.mxu0 %v1750
        %1828 = vmatprep.subr.mxu0 0.0
        %1829 = vmatpush1.msra.mxu0 %v1751
        %1830 = vmatprep.subr.mxu0 0.0
        %1831 = vmatpush1.msra.mxu0 %v1752
        %1832 = vmatprep.subr.mxu0 0.0
        %1833 = vmatpush1.msra.mxu0 %v1753
        %1834 = vmatprep.subr.mxu0 0.0
        %1835 = vmatpush1.msra.mxu0 %v1754
        %1836 = vmatprep.subr.mxu0 0.0
        %1837 = vmatpush1.msra.mxu0 %v1755
        %1838 = vmatprep.subr.mxu0 0.0
        %1839 = vmatpush1.msra.mxu0 %v1756
        %1840 = vmatprep.subr.mxu0 0.0
        %1841 = vmatpush1.msra.mxu0 %v1757
        %1842 = vmatprep.subr.mxu0 0.0
        %1843 = vmatpush1.msra.mxu0 %v1758
        %1844 = vmatprep.subr.mxu0 0.0
        %1845 = vmatpush1.msra.mxu0 %v1759
        %1846 = vmatprep.subr.mxu0 0.0
        %1847 = vmatpush1.msra.mxu0 %v1760
        %1848 = vmatprep.subr.mxu0 0.0
        %1849 = vmatpush1.msra.mxu0 %v1761
        %1850 = vmatprep.subr.mxu0 0.0
        %1851 = vmatpush1.msra.mxu0 %v1762
        %1852 = vmatprep.subr.mxu0 0.0
        %1853 = vmatpush1.msra.mxu0 %v1763
        %1854 = vmatprep.subr.mxu0 0.0
        %1855 = vmatpush1.msra.mxu0 %v1764
        %1856 = vmatprep.subr.mxu0 0.0
        %1857 = vmatpush1.msra.mxu0 %v1765
        %1858 = vmatprep.subr.mxu0 0.0
        %1859 = vmatpush1.msra.mxu0 %v1766
        %1860 = vmatprep.subr.mxu0 0.0
        %1861 = vmatpush1.msra.mxu0 %v1767
        %1862 = vmatprep.subr.mxu0 0.0
        %1863 = vmatpush1.msra.mxu0 %v1768
        %1864 = vmatprep.subr.mxu0 0.0
        %1865 = vmatpush1.msra.mxu0 %v1769
        %1866 = vmatprep.subr.mxu0 0.0
        %1867 = vmatpush1.msra.mxu0 %v1770
        %1868 = vmatprep.subr.mxu0 0.0
        %1869 = vmatpush1.msra.mxu0 %v1771
        %1870 = vmatprep.subr.mxu0 0.0
        %1871 = vmatpush1.msra.mxu0 %v1772
        %1872 = vmatprep.mubr.f32.mxu0 %v1718
        %1873 = vmatmul.mubr.f32.gmra.mrb[0].mxu0 %v1717
        %v1874 = vpop.f32.mrb[0].mxu0
        %v1875 = vadd.f32 %v1782, %v1874
        %v1876 = vpop.f32.mrb[0].mxu0
        %1877 = vmatprep.mubr.f32.mxu0 %v1721
        %1878 = vmatmul.mubr.f32.gmra.mrb[0].mxu0 %v1720
        %v1879 = vpop.f32.mrb[0].mxu0
        %v1880 = vadd.f32 %v1782, %v1879
        %v1881 = vpop.f32.mrb[0].mxu0
        %1882 = vmatprep.mubr.f32.mxu0 %v1724
        %1883 = vmatmul.mubr.f32.gmra.mrb[0].mxu0 %v1723
        %v1884 = vpop.f32.mrb[0].mxu0
        %v1885 = vadd.f32 %v1782, %v1884
        %v1886 = vpop.f32.mrb[0].mxu0
        %1887 = vmatprep.mubr.f32.mxu0 %v1727
        %1888 = vmatmul.mubr.f32.gmra.mrb[0].mxu0 %v1726
        %v1889 = vpop.f32.mrb[0].mxu0
        %v1890 = vadd.f32 %v1782, %v1889
        %v1891 = vpop.f32.mrb[0].mxu0
        %1892 = vmatprep.mubr.f32.mxu0 %v1730
        %1893 = vmatmul.mubr.f32.gmra.mrb[0].mxu0 %v1729
        %v1894 = vpop.f32.mrb[0].mxu0
        %v1895 = vadd.f32 %v1782, %v1894
        %v1896 = vpop.f32.mrb[0].mxu0
        %1897 = vmatprep.mubr.f32.mxu0 %v1733
        %1898 = vmatmul.mubr.f32.gmra.mrb[0].mxu0 %v1732
        %v1899 = vpop.f32.mrb[0].mxu0
        %v1900 = vadd.f32 %v1782, %v1899
        %v1901 = vpop.f32.mrb[0].mxu0
        %1902 = vmatprep.mubr.f32.mxu0 %v1736
        %1903 = vmatmul.mubr.f32.gmra.mrb[0].mxu0 %v1735
        %v1904 = vpop.f32.mrb[0].mxu0
        %v1905 = vadd.f32 %v1782, %v1904
        %v1906 = vpop.f32.mrb[0].mxu0
        %1907 = vmatprep.mubr.f32.mxu0 %v1739
        %1908 = vmatmul.mubr.f32.gmra.mrb[0].mxu0 %v1738
        %v1909 = vpop.f32.mrb[0].mxu0
        %v1910 = vadd.f32 %v1782, %v1909
        %v1911 = vpop.f32.mrb[0].mxu0
        %1912 = vdwg.mxu0
        %1913 = vmatprep.subr.mxu0 0.0
        %1914 = vmatpush1.msra.mxu0 %v1773
        %1915 = vmatprep.subr.mxu0 0.0
        %1916 = vmatpush1.msra.mxu0 %v1774
        %1917 = vmatprep.subr.mxu0 0.0
        %1918 = vmatpush1.msra.mxu0 %v1775
        %1919 = vmatprep.subr.mxu0 0.0
        %1920 = vmatpush1.msra.mxu0 %v1776
        %1921 = vmatprep.subr.mxu0 0.0
        %1922 = vmatpush1.msra.mxu0 0.0
        %1923 = vmatprep.subr.mxu0 0.0
        %1924 = vmatpush1.msra.mxu0 0.0
        %1925 = vmatprep.subr.mxu0 0.0
        %1926 = vmatpush1.msra.mxu0 0.0
        %1927 = vmatprep.subr.mxu0 0.0
        %1928 = vmatpush1.msra.mxu0 0.0
        %1929 = vmatprep.subr.mxu0 0.0
        %1930 = vmatpush1.msra.mxu0 0.0
        %1931 = vmatprep.subr.mxu0 0.0
        %1932 = vmatpush1.msra.mxu0 0.0
        %1933 = vmatprep.subr.mxu0 0.0
        %1934 = vmatpush1.msra.mxu0 0.0
        %1935 = vmatprep.subr.mxu0 0.0
        %1936 = vmatpush1.msra.mxu0 0.0
        %1937 = vmatprep.subr.mxu0 0.0
        %1938 = vmatpush1.msra.mxu0 0.0
        %1939 = vmatprep.subr.mxu0 0.0
        %1940 = vmatpush1.msra.mxu0 0.0
        %1941 = vmatprep.subr.mxu0 0.0
        %1942 = vmatpush1.msra.mxu0 0.0
        %1943 = vmatprep.subr.mxu0 0.0
        %1944 = vmatpush1.msra.mxu0 0.0
        %1945 = vmatprep.subr.mxu0 0.0
        %1946 = vmatpush1.msra.mxu0 0.0
        %1947 = vmatprep.subr.mxu0 0.0
        %1948 = vmatpush1.msra.mxu0 0.0
        %1949 = vmatprep.subr.mxu0 0.0
        %1950 = vmatpush1.msra.mxu0 0.0
        %1951 = vmatprep.subr.mxu0 0.0
        %1952 = vmatpush1.msra.mxu0 0.0
        %1953 = vmatprep.subr.mxu0 0.0
        %1954 = vmatpush1.msra.mxu0 0.0
        %1955 = vmatprep.subr.mxu0 0.0
        %1956 = vmatpush1.msra.mxu0 0.0
        %1957 = vmatprep.subr.mxu0 0.0
        %1958 = vmatpush1.msra.mxu0 0.0
        %1959 = vmatprep.subr.mxu0 0.0
        %1960 = vmatpush1.msra.mxu0 0.0
        %1961 = vmatprep.subr.mxu0 0.0
        %1962 = vmatpush1.msra.mxu0 0.0
        %1963 = vmatprep.subr.mxu0 0.0
        %1964 = vmatpush1.msra.mxu0 0.0
        %1965 = vmatprep.subr.mxu0 0.0
        %1966 = vmatpush1.msra.mxu0 0.0
        %1967 = vmatprep.subr.mxu0 0.0
        %1968 = vmatpush1.msra.mxu0 0.0
        %1969 = vmatprep.subr.mxu0 0.0
        %1970 = vmatpush1.msra.mxu0 0.0
        %1971 = vmatprep.subr.mxu0 0.0
        %1972 = vmatpush1.msra.mxu0 0.0
        %1973 = vmatprep.subr.mxu0 0.0
        %1974 = vmatpush1.msra.mxu0 0.0
        %1975 = vmatprep.subr.mxu0 0.0
        %1976 = vmatpush1.msra.mxu0 0.0
        %1977 = vmatprep.mubr.f32.mxu0 0.0
        %1978 = vmatmul.mubr.f32.gmra.mrb[0].mxu0 %v1785
        %v1979 = vpop.f32.mrb[0].mxu0
        %v1980 = vadd.f32 %v1875, %v1979
        %v1981 = vpop.f32.mrb[0].mxu0
        %1982 = vmatprep.mubr.f32.mxu0 0.0
        %1983 = vmatmul.mubr.f32.gmra.mrb[0].mxu0 %v1788
        %v1984 = vpop.f32.mrb[0].mxu0
        %v1985 = vadd.f32 %v1880, %v1984
        %v1986 = vpop.f32.mrb[0].mxu0
        %1987 = vmatprep.mubr.f32.mxu0 0.0
        %1988 = vmatmul.mubr.f32.gmra.mrb[0].mxu0 %v1791
        %v1989 = vpop.f32.mrb[0].mxu0
        %v1990 = vadd.f32 %v1885, %v1989
        %v1991 = vpop.f32.mrb[0].mxu0
        %1992 = vmatprep.mubr.f32.mxu0 0.0
        %1993 = vmatmul.mubr.f32.gmra.mrb[0].mxu0 %v1794
        %v1994 = vpop.f32.mrb[0].mxu0
        %v1995 = vadd.f32 %v1890, %v1994
        %v1996 = vpop.f32.mrb[0].mxu0
        %1997 = vmatprep.mubr.f32.mxu0 0.0
        %1998 = vmatmul.mubr.f32.gmra.mrb[0].mxu0 %v1797
        %v1999 = vpop.f32.mrb[0].mxu0
        %v2000 = vadd.f32 %v1895, %v1999
        %v2001 = vpop.f32.mrb[0].mxu0
        %2002 = vmatprep.mubr.f32.mxu0 0.0
        %2003 = vmatmul.mubr.f32.gmra.mrb[0].mxu0 %v1800
        %v2004 = vpop.f32.mrb[0].mxu0
        %v2005 = vadd.f32 %v1900, %v2004
        %v2006 = vpop.f32.mrb[0].mxu0
        %2007 = vmatprep.mubr.f32.mxu0 0.0
        %2008 = vmatmul.mubr.f32.gmra.mrb[0].mxu0 %v1803
        %v2009 = vpop.f32.mrb[0].mxu0
        %v2010 = vadd.f32 %v1905, %v2009
        %v2011 = vpop.f32.mrb[0].mxu0
        %2012 = vmatprep.mubr.f32.mxu0 0.0
        %2013 = vmatmul.mubr.f32.gmra.mrb[0].mxu0 %v1806
        %v2014 = vpop.f32.mrb[0].mxu0
        %v2015 = vadd.f32 %v1910, %v2014
        %v2016 = vpop.f32.mrb[0].mxu0
        %2017 = vdwg.mxu0
        %v2018 = vmax.f32 %v1980, 0.0
        %v2019 = vmax.f32 %v1985, 0.0
        %v2020 = vmax.f32 %v1990, 0.0
        %v2021 = vmax.f32 %v1995, 0.0
        %v2022 = vmax.f32 %v2000, 0.0
        %v2023 = vmax.f32 %v2005, 0.0
        %v2024 = vmax.f32 %v2010, 0.0
        %v2025 = vmax.f32 %v2015, 0.0
        %v2026 = vlaneseq
        %v2027 = vshrl.u32 %v2026, 7
        %v2028 = vadd.s32 %v2027, 8
        %v2029 = vadd.s32 %v2027, 16
        %v2030 = vadd.s32 %v2027, 24
        %v2031 = vadd.s32 %v2027, 32
        %v2032 = vadd.s32 %v2027, 40
        %v2033 = vadd.s32 %v2027, 48
        %v2034 = vadd.s32 %v2027, 56
        %vm2035 = vcmp.lt.s32.totalorder %v2027, 0
        %v2036 = vsub.s32 0, %v2027
        %v2037 = vsel %vm2035, %v2036, %v2027
        %v2038 = vshrl.u32 %v2037, 4
        %v2039 = vand.u32 %v2037, 15
        %v2040 = vsub.s32 0, %v2039
        %v2041 = vsel %vm2035, %v2040, %v2039
        %vm2042 = vcmp.lt.s32.totalorder %v2028, 0
        %v2043 = vsub.s32 0, %v2028
        %v2044 = vsel %vm2042, %v2043, %v2028
        %v2045 = vshrl.u32 %v2044, 4
        %v2046 = vand.u32 %v2044, 15
        %v2047 = vsub.s32 0, %v2046
        %v2048 = vsel %vm2042, %v2047, %v2046
        %vm2049 = vcmp.lt.s32.totalorder %v2029, 0
        %v2050 = vsub.s32 0, %v2029
        %v2051 = vsel %vm2049, %v2050, %v2029
        %v2052 = vshrl.u32 %v2051, 4
        %v2053 = vand.u32 %v2051, 15
        %v2054 = vsub.s32 0, %v2053
        %v2055 = vsel %vm2049, %v2054, %v2053
        %vm2056 = vcmp.lt.s32.totalorder %v2030, 0
        %v2057 = vsub.s32 0, %v2030
        %v2058 = vsel %vm2056, %v2057, %v2030
        %v2059 = vshrl.u32 %v2058, 4
        %v2060 = vand.u32 %v2058, 15
        %v2061 = vsub.s32 0, %v2060
        %v2062 = vsel %vm2056, %v2061, %v2060
        %vm2063 = vcmp.lt.s32.totalorder %v2031, 0
        %v2064 = vsub.s32 0, %v2031
        %v2065 = vsel %vm2063, %v2064, %v2031
        %v2066 = vshrl.u32 %v2065, 4
        %v2067 = vand.u32 %v2065, 15
        %v2068 = vsub.s32 0, %v2067
        %v2069 = vsel %vm2063, %v2068, %v2067
        %vm2070 = vcmp.lt.s32.totalorder %v2032, 0
        %v2071 = vsub.s32 0, %v2032
        %v2072 = vsel %vm2070, %v2071, %v2032
        %v2073 = vshrl.u32 %v2072, 4
        %v2074 = vand.u32 %v2072, 15
        %v2075 = vsub.s32 0, %v2074
        %v2076 = vsel %vm2070, %v2075, %v2074
        %vm2077 = vcmp.lt.s32.totalorder %v2033, 0
        %v2078 = vsub.s32 0, %v2033
        %v2079 = vsel %vm2077, %v2078, %v2033
        %v2080 = vshrl.u32 %v2079, 4
        %v2081 = vand.u32 %v2079, 15
        %v2082 = vsub.s32 0, %v2081
        %v2083 = vsel %vm2077, %v2082, %v2081
        %vm2084 = vcmp.lt.s32.totalorder %v2034, 0
        %v2085 = vsub.s32 0, %v2034
        %v2086 = vsel %vm2084, %v2085, %v2034
        %v2087 = vshrl.u32 %v2086, 4
        %v2088 = vand.u32 %v2086, 15
        %v2089 = vsub.s32 0, %v2088
        %v2090 = vsel %vm2084, %v2089, %v2088
        %vm2091 = vcmp.ne.s32.totalorder %v2041, 0
        %vm2092 = vcmp.ne.s32.totalorder %v2048, 0
        %vm2093 = vcmp.ne.s32.totalorder %v2055, 0
        %vm2094 = vcmp.ne.s32.totalorder %v2062, 0
        %vm2095 = vcmp.ne.s32.totalorder %v2069, 0
        %vm2096 = vcmp.ne.s32.totalorder %v2076, 0
        %vm2097 = vcmp.ne.s32.totalorder %v2083, 0
        %vm2098 = vcmp.ne.s32.totalorder %v2090, 0
        %vm2099 = vcmp.lt.s32.totalorder %v2041, 0
        %vm2100 = vcmp.lt.s32.totalorder %v2048, 0
        %vm2101 = vcmp.lt.s32.totalorder %v2055, 0
        %vm2102 = vcmp.lt.s32.totalorder %v2062, 0
        %vm2103 = vcmp.lt.s32.totalorder %v2069, 0
        %vm2104 = vcmp.lt.s32.totalorder %v2076, 0
        %vm2105 = vcmp.lt.s32.totalorder %v2083, 0
        %vm2106 = vcmp.lt.s32.totalorder %v2090, 0
        %vm2107 = vmand %vm2099, %vm2091
        %vm2108 = vmand %vm2100, %vm2092
        %vm2109 = vmand %vm2101, %vm2093
        %vm2110 = vmand %vm2102, %vm2094
        %vm2111 = vmand %vm2103, %vm2095
        %vm2112 = vmand %vm2104, %vm2096
        %vm2113 = vmand %vm2105, %vm2097
        %vm2114 = vmand %vm2106, %vm2098
        %v2115 = vadd.s32 %v2041, 16
        %v2116 = vadd.s32 %v2048, 16
        %v2117 = vadd.s32 %v2055, 16
        %v2118 = vadd.s32 %v2062, 16
        %v2119 = vadd.s32 %v2069, 16
        %v2120 = vadd.s32 %v2076, 16
        %v2121 = vadd.s32 %v2083, 16
        %v2122 = vadd.s32 %v2090, 16
        %v2123 = vsel %vm2107, %v2115, %v2041
        %v2124 = vsel %vm2108, %v2116, %v2048
        %v2125 = vsel %vm2109, %v2117, %v2055
        %v2126 = vsel %vm2110, %v2118, %v2062
        %v2127 = vsel %vm2111, %v2119, %v2069
        %v2128 = vsel %vm2112, %v2120, %v2076
        %v2129 = vsel %vm2113, %v2121, %v2083
        %v2130 = vsel %vm2114, %v2122, %v2090
        %vm2131 = vcmp.lt.s32.totalorder %v2123, 8
        %vm2132 = vcmp.lt.s32.totalorder %v2124, 8
        %vm2133 = vcmp.lt.s32.totalorder %v2125, 8
        %vm2134 = vcmp.lt.s32.totalorder %v2126, 8
        %vm2135 = vcmp.lt.s32.totalorder %v2127, 8
        %vm2136 = vcmp.lt.s32.totalorder %v2128, 8
        %vm2137 = vcmp.lt.s32.totalorder %v2129, 8
        %vm2138 = vcmp.lt.s32.totalorder %v2130, 8
        %vm2139 = vcmp.lt.s32.totalorder %v2027, 0
        %v2140 = vsub.s32 0, %v2027
        %v2141 = vsel %vm2139, %v2140, %v2027
        %v2142 = vshrl.u32 %v2141, 1
        %v2143 = vand.u32 %v2141, 1
        %v2144 = vsub.s32 0, %v2143
        %v2145 = vsel %vm2139, %v2144, %v2143
        %vm2146 = vcmp.lt.s32.totalorder %v2028, 0
        %v2147 = vsub.s32 0, %v2028
        %v2148 = vsel %vm2146, %v2147, %v2028
        %v2149 = vshrl.u32 %v2148, 1
        %v2150 = vand.u32 %v2148, 1
        %v2151 = vsub.s32 0, %v2150
        %v2152 = vsel %vm2146, %v2151, %v2150
        %vm2153 = vcmp.lt.s32.totalorder %v2029, 0
        %v2154 = vsub.s32 0, %v2029
        %v2155 = vsel %vm2153, %v2154, %v2029
        %v2156 = vshrl.u32 %v2155, 1
        %v2157 = vand.u32 %v2155, 1
        %v2158 = vsub.s32 0, %v2157
        %v2159 = vsel %vm2153, %v2158, %v2157
        %vm2160 = vcmp.lt.s32.totalorder %v2030, 0
        %v2161 = vsub.s32 0, %v2030
        %v2162 = vsel %vm2160, %v2161, %v2030
        %v2163 = vshrl.u32 %v2162, 1
        %v2164 = vand.u32 %v2162, 1
        %v2165 = vsub.s32 0, %v2164
        %v2166 = vsel %vm2160, %v2165, %v2164
        %vm2167 = vcmp.lt.s32.totalorder %v2031, 0
        %v2168 = vsub.s32 0, %v2031
        %v2169 = vsel %vm2167, %v2168, %v2031
        %v2170 = vshrl.u32 %v2169, 1
        %v2171 = vand.u32 %v2169, 1
        %v2172 = vsub.s32 0, %v2171
        %v2173 = vsel %vm2167, %v2172, %v2171
        %vm2174 = vcmp.lt.s32.totalorder %v2032, 0
        %v2175 = vsub.s32 0, %v2032
        %v2176 = vsel %vm2174, %v2175, %v2032
        %v2177 = vshrl.u32 %v2176, 1
        %v2178 = vand.u32 %v2176, 1
        %v2179 = vsub.s32 0, %v2178
        %v2180 = vsel %vm2174, %v2179, %v2178
        %vm2181 = vcmp.lt.s32.totalorder %v2033, 0
        %v2182 = vsub.s32 0, %v2033
        %v2183 = vsel %vm2181, %v2182, %v2033
        %v2184 = vshrl.u32 %v2183, 1
        %v2185 = vand.u32 %v2183, 1
        %v2186 = vsub.s32 0, %v2185
        %v2187 = vsel %vm2181, %v2186, %v2185
        %vm2188 = vcmp.lt.s32.totalorder %v2034, 0
        %v2189 = vsub.s32 0, %v2034
        %v2190 = vsel %vm2188, %v2189, %v2034
        %v2191 = vshrl.u32 %v2190, 1
        %v2192 = vand.u32 %v2190, 1
        %v2193 = vsub.s32 0, %v2192
        %v2194 = vsel %vm2188, %v2193, %v2192
        %vm2195 = vcmp.ne.s32.totalorder %v2145, 0
        %vm2196 = vcmp.ne.s32.totalorder %v2152, 0
        %vm2197 = vcmp.ne.s32.totalorder %v2159, 0
        %vm2198 = vcmp.ne.s32.totalorder %v2166, 0
        %vm2199 = vcmp.ne.s32.totalorder %v2173, 0
        %vm2200 = vcmp.ne.s32.totalorder %v2180, 0
        %vm2201 = vcmp.ne.s32.totalorder %v2187, 0
        %vm2202 = vcmp.ne.s32.totalorder %v2194, 0
        %vm2203 = vcmp.lt.s32.totalorder %v2145, 0
        %vm2204 = vcmp.lt.s32.totalorder %v2152, 0
        %vm2205 = vcmp.lt.s32.totalorder %v2159, 0
        %vm2206 = vcmp.lt.s32.totalorder %v2166, 0
        %vm2207 = vcmp.lt.s32.totalorder %v2173, 0
        %vm2208 = vcmp.lt.s32.totalorder %v2180, 0
        %vm2209 = vcmp.lt.s32.totalorder %v2187, 0
        %vm2210 = vcmp.lt.s32.totalorder %v2194, 0
        %vm2211 = vmand %vm2203, %vm2195
        %vm2212 = vmand %vm2204, %vm2196
        %vm2213 = vmand %vm2205, %vm2197
        %vm2214 = vmand %vm2206, %vm2198
        %vm2215 = vmand %vm2207, %vm2199
        %vm2216 = vmand %vm2208, %vm2200
        %vm2217 = vmand %vm2209, %vm2201
        %vm2218 = vmand %vm2210, %vm2202
        %v2219 = vadd.s32 %v2145, 2
        %v2220 = vadd.s32 %v2152, 2
        %v2221 = vadd.s32 %v2159, 2
        %v2222 = vadd.s32 %v2166, 2
        %v2223 = vadd.s32 %v2173, 2
        %v2224 = vadd.s32 %v2180, 2
        %v2225 = vadd.s32 %v2187, 2
        %v2226 = vadd.s32 %v2194, 2
        %v2227 = vsel %vm2211, %v2219, %v2145
        %v2228 = vsel %vm2212, %v2220, %v2152
        %v2229 = vsel %vm2213, %v2221, %v2159
        %v2230 = vsel %vm2214, %v2222, %v2166
        %v2231 = vsel %vm2215, %v2223, %v2173
        %v2232 = vsel %vm2216, %v2224, %v2180
        %v2233 = vsel %vm2217, %v2225, %v2187
        %v2234 = vsel %vm2218, %v2226, %v2194
        %vm2235 = vcmp.eq.s32.totalorder %v2227, 0
        %vm2236 = vcmp.eq.s32.totalorder %v2228, 0
        %vm2237 = vcmp.eq.s32.totalorder %v2229, 0
        %vm2238 = vcmp.eq.s32.totalorder %v2230, 0
        %vm2239 = vcmp.eq.s32.totalorder %v2231, 0
        %vm2240 = vcmp.eq.s32.totalorder %v2232, 0
        %vm2241 = vcmp.eq.s32.totalorder %v2233, 0
        %vm2242 = vcmp.eq.s32.totalorder %v2234, 0
        %vm2243 = vmand %vm2131, %vm2235
        %vm2244 = vmand %vm2132, %vm2236
        %vm2245 = vmand %vm2133, %vm2237
        %vm2246 = vmand %vm2134, %vm2238
        %vm2247 = vmand %vm2135, %vm2239
        %vm2248 = vmand %vm2136, %vm2240
        %vm2249 = vmand %vm2137, %vm2241
        %vm2250 = vmand %vm2138, %vm2242
        %v2251 = vsel %vm2243, %v2018, -inf
        %v2252 = vsel %vm2244, %v2019, -inf
        %v2253 = vsel %vm2245, %v2020, -inf
        %v2254 = vsel %vm2246, %v2021, -inf
        %v2255 = vsel %vm2247, %v2022, -inf
        %v2256 = vsel %vm2248, %v2023, -inf
        %v2257 = vsel %vm2249, %v2024, -inf
        %v2258 = vsel %vm2250, %v2025, -inf
        %v2259 = vsel %vm352, %v2251, -inf
        %v2260 = vsel %vm352, %v2252, -inf
        %v2261 = vsel %vm352, %v2253, -inf
        %v2262 = vsel %vm352, %v2254, -inf
        %v2263 = vsel %vm352, %v2255, -inf
        %v2264 = vmax.f32 %v2259, %v2263
        %v2265 = vsel %vm352, %v2256, -inf
        %v2266 = vmax.f32 %v2260, %v2265
        %v2267 = vsel %vm352, %v2257, -inf
        %v2268 = vmax.f32 %v2261, %v2267
        %v2269 = vsel %vm352, %v2258, -inf
        %v2270 = vmax.f32 %v2262, %v2269
        %v2271 = vmax.f32 %v2264, %v2266
        %v2272 = vmax.f32 %v2268, %v2270
        %v2273 = vmax.f32 %v2271, %v2272
        %v2274 = vrot.slane %v2273, 4
        %v2275 = vmax.f32 %v2273, %v2274
        %v2276 = vrot.slane %v2275, 2
        %v2277 = vmax.f32 %v2275, %v2276
        %v2278 = vrot.slane %v2277, 1
        %v2279 = vmax.f32 %v2277, %v2278
        %v2280 = vld [vmem:[%s7] sm:$0xff]
        %v2281 = vld [vmem:[%s7 + $0x8] sm:$0xff]
        %v2282 = vld [vmem:[%s7 + $0x10] sm:$0xff]
        %v2283 = vld [vmem:[%s7 + $0x18] sm:$0xff]
        %v2284 = vld [vmem:[%s8] sm:$0x1]
        %v2286 = vsel %vm352, %v2279, 0
        %2288 = vmatprep.subr.mxu0 0.0
        %2289 = vmatpush1.msra.mxu0 %v2280
        %2290 = vmatprep.subr.mxu0 0.0
        %2291 = vmatpush1.msra.mxu0 %v2281
        %2292 = vmatprep.subr.mxu0 0.0
        %2293 = vmatpush1.msra.mxu0 %v2282
        %2294 = vmatprep.subr.mxu0 0.0
        %2295 = vmatpush1.msra.mxu0 %v2283
        %2296 = vmatprep.subr.mxu0 0.0
        %2297 = vmatpush1.msra.mxu0 0.0
        %2298 = vmatprep.subr.mxu0 0.0
        %2299 = vmatpush1.msra.mxu0 0.0
        %2300 = vmatprep.subr.mxu0 0.0
        %2301 = vmatpush1.msra.mxu0 0.0
        %2302 = vmatprep.subr.mxu0 0.0
        %2303 = vmatpush1.msra.mxu0 0.0
        %2304 = vmatprep.subr.mxu0 0.0
        %2305 = vmatpush1.msra.mxu0 0.0
        %2306 = vmatprep.subr.mxu0 0.0
        %2307 = vmatpush1.msra.mxu0 0.0
        %2308 = vmatprep.subr.mxu0 0.0
        %2309 = vmatpush1.msra.mxu0 0.0
        %2310 = vmatprep.subr.mxu0 0.0
        %2311 = vmatpush1.msra.mxu0 0.0
        %2312 = vmatprep.subr.mxu0 0.0
        %2313 = vmatpush1.msra.mxu0 0.0
        %2314 = vmatprep.subr.mxu0 0.0
        %2315 = vmatpush1.msra.mxu0 0.0
        %2316 = vmatprep.subr.mxu0 0.0
        %2317 = vmatpush1.msra.mxu0 0.0
        %2318 = vmatprep.subr.mxu0 0.0
        %2319 = vmatpush1.msra.mxu0 0.0
        %2320 = vmatprep.subr.mxu0 0.0
        %2321 = vmatpush1.msra.mxu0 0.0
        %2322 = vmatprep.subr.mxu0 0.0
        %2323 = vmatpush1.msra.mxu0 0.0
        %2324 = vmatprep.subr.mxu0 0.0
        %2325 = vmatpush1.msra.mxu0 0.0
        %2326 = vmatprep.subr.mxu0 0.0
        %2327 = vmatpush1.msra.mxu0 0.0
        %2328 = vmatprep.subr.mxu0 0.0
        %2329 = vmatpush1.msra.mxu0 0.0
        %2330 = vmatprep.subr.mxu0 0.0
        %2331 = vmatpush1.msra.mxu0 0.0
        %2332 = vmatprep.subr.mxu0 0.0
        %2333 = vmatpush1.msra.mxu0 0.0
        %2334 = vmatprep.subr.mxu0 0.0
        %2335 = vmatpush1.msra.mxu0 0.0
        %2336 = vmatprep.subr.mxu0 0.0
        %2337 = vmatpush1.msra.mxu0 0.0
        %2338 = vmatprep.subr.mxu0 0.0
        %2339 = vmatpush1.msra.mxu0 0.0
        %2340 = vmatprep.subr.mxu0 0.0
        %2341 = vmatpush1.msra.mxu0 0.0
        %2342 = vmatprep.subr.mxu0 0.0
        %2343 = vmatpush1.msra.mxu0 0.0
        %2344 = vmatprep.subr.mxu0 0.0
        %2345 = vmatpush1.msra.mxu0 0.0
        %2346 = vmatprep.subr.mxu0 0.0
        %2347 = vmatpush1.msra.mxu0 0.0
        %2348 = vmatprep.subr.mxu0 0.0
        %2349 = vmatpush1.msra.mxu0 0.0
        %2350 = vmatprep.subr.mxu0 0.0
        %2351 = vmatpush1.msra.mxu0 0.0
        %2352 = vmatprep.mubr.f32.mxu0 0.0
        %2353 = vmatmul.mubr.f32.gmra.mrb[0].mxu0 %v2286
        %v2354 = vpop.f32.mrb[0].mxu0
        %v2355 = vadd.f32 %v2284, %v2354
        %v2356 = vpop.f32.mrb[0].mxu0
        %2357 = vdwg.mxu0
        %vm2358 = vcmask 122880
        %2359 = vst.msk [vmem:[%s324] sm:$0x1] %vm2358, %v2355
        %s2360 = sand.u32 %s225, 1
        %s2361 = scalar_lea.sflag [#allocation6], %s2360
        %s2362 = sand.u32 %s225, 1
        %s2363 = scalar_lea.vmem [#allocation5], %s2362
        // Predicated region
        $region57: #{fcn_forward.1} parent=55 // pred_check
          %p2364 = pneg %p235
        $region58: #{fcn_forward.1} parent=55 // pred_check_branch
          %2366 = sbr.rel (%p2364) target = $region60
        $region59: #{fcn_forward.1} parent=55 // pred_region
          %s2368 = ssub.s32 16, 16
          %2369 = vsyncadd %s2361, %s2368
          %s2370 = smul.addr %s23, 16
          %s2371 = scalar_lea.hbm %s9, %s2370
          %s2373 = sshll.u32 %s2363, 4
          %s2374 = int_to_ptr.vmem [resolvable:$true] %s2373
          %2376 = dma.vmem_to_hbm [thread:$0]  %s2374, 16, %s2371, %s2361
        $region60: #{fcn_forward.1} parent=55 // pred_fallthru
          _
      $region56: #{fcn_forward.1} parent=5 // pred_fallthru
        _
      %p2377 = scmp.le.s32.totalorder 2, %s18
      // Predicated region
      $region61: #{fcn_forward.1} parent=5 // pred_check
        %p2378 = pneg %p2377
      $region62: #{fcn_forward.1} parent=5 // pred_check_branch
        %2380 = sbr.rel (%p2378) target = $region64
      $region63: #{fcn_forward.1} parent=5 // pred_region
        %s2381 = ssub.s32 %s18, 2
        // Predicated region
        $region65: #{fcn_forward.1} parent=63 // pred_check
          %p2382 = pneg %p241
        $region66: #{fcn_forward.1} parent=63 // pred_check_branch
          %2384 = sbr.rel (%p2382) target = $region68
        $region67: #{fcn_forward.1} parent=63 // pred_region
          %s2385 = sand.u32 %s226, 1
          %s2386 = scalar_lea.sflag [#allocation6], %s2385
          %s2387 = sand.u32 %s226, 1
          %s2388 = scalar_lea.vmem [#allocation5], %s2387
          %2389 = dma.done %s2386, 16
        $region68: #{fcn_forward.1} parent=63 // pred_fallthru
          _
      $region64: #{fcn_forward.1} parent=5 // pred_fallthru
        _
    $region6: #{fcn_forward.1} parent=1 // loop_footer
      %s22 = sadd.s32 1, %s18
    $region7: #{fcn_forward.1} parent=1 // loop_footer_branch
      %17 = sbr.rel target = $region3
    $region8: #{fcn_forward.1} parent=1 // loop_exit
      _
    %2390 = vsyncpa [#allocation6], 1
    %s2391 = scalar_lea.sflag [#allocation6], 1
    %2392 = vsyncpa %s2391, 1

</llo_original>
